<compile_context>
chip_gen: v7x
topology: tpu7x:2x2x1
jax: 0.10.0
libtpu: 0.0.40
codegen_flags: <defaults>
</compile_context>

<pallas_src>
import functools
import math

import jax
import jax.numpy as jnp
from jax.experimental import pallas as pl
from jax.experimental.pallas import tpu as pltpu

_SUB = 16  # sublane granule for slab rows (bf16-matmul / bf16-output friendly)


def _gaussian_basis_kernel(r_ref, sel_ref, off_ref, o_ref, *, gamma):
    """One lane-dense output tile.

    r_ref:   (ROWS, GROUP)  f32   GROUP consecutive r values per slab row
    sel_ref: (GROUP, LANES) bf16  0/1 selector, sel[j, j*G + g] = 1 (VMEM-resident)
    off_ref: (1, LANES)     f32   offsets tiled GROUP times        (VMEM-resident)
    o_ref:   (ROWS, LANES)  out   o[i, j*G+g] = exp(gamma*(r[i,j]-offset[g])^2)
    """
    r = r_ref[...]
    # Exact 3-way bf16 split of f32 r (hi + mid + lo == r bit-exactly), so the
    # MXU replication below is exact at plain bf16 matmul precision.
    hi = r.astype(jnp.bfloat16)
    rem = r - hi.astype(jnp.float32)
    mid = rem.astype(jnp.bfloat16)
    lo = (rem - mid.astype(jnp.float32)).astype(jnp.bfloat16)

    sel = sel_ref[...]

    def rep(chunk):  # replicate each r value across its G lanes on the idle MXU
        return jnp.dot(chunk, sel, preferred_element_type=jnp.float32)

    r_exp = rep(hi) + rep(mid) + rep(lo)          # (ROWS, LANES) == r replicated, exact
    d = r_exp - off_ref[...]                      # (1, LANES) broadcast over sublanes
    # Full-width VPU muls + EUP exp + unmasked lane-dense store.
    o_ref[...] = jnp.exp(gamma * (d * d)).astype(o_ref.dtype)


def gaussian_basis_projection(r, *, start=0.0, stop=5.0, num_gaussians=50,
                              rows_per_tile=256, out_dtype=jnp.float32):
    """Pallas implementation of GaussianBasisProjection.forward -> (N, G)."""
    if num_gaussians < 2:
        raise ValueError("num_gaussians must be >= 2")

    g = num_gaussians
    step = (stop - start) / (g - 1)
    gamma = -0.5 / step ** 2                      # static python scalar, as in PyTorch

    # Lane-dense packing: GROUP consecutive r values per slab row so that the
    # slab row width GROUP*G is a multiple of 128 lanes (G=50 -> GROUP=64).
    group = 128 // math.gcd(g, 128)
    lanes = group * g

    r_flat = r.reshape(-1).astype(jnp.float32)
    n = r_flat.shape[0]

    slab_rows = max(_SUB, -(-n // group))         # >= 16 keeps the MXU M-dim sane
    n_pad = slab_rows * group
    if n_pad != n:
        # Pad only the input (G-times smaller than the output).
        r_flat = jnp.pad(r_flat, (0, n_pad - n))
    r_slab = r_flat.reshape(slab_rows, group)

    # Tile sizing: rows_per_tile slab rows (= rows_per_tile*GROUP r values).
    rpt = min(int(rows_per_tile), slab_rows)
    if slab_rows >= 2 * _SUB:
        rpt = min(rpt, -(-slab_rows // 2))        # grid_n >= 2: feed both v7x TCs
    rpt = max(_SUB, (rpt // _SUB) * _SUB)
    grid_n = -(-slab_rows // rpt)

    # Constant operands; their block index never changes so Pallas fetches them
    # once and keeps them resident in VMEM.
    offset = jnp.linspace(start, stop, g, dtype=jnp.float32)     # == torch buffer
    off_row = jnp.tile(offset, group).reshape(1, lanes)
    lane = jnp.arange(lanes, dtype=jnp.int32)
    sel = (lane[None, :] // g == jnp.arange(group, dtype=jnp.int32)[:, None])
    sel = sel.astype(jnp.bfloat16)                               # (GROUP, LANES) 0/1

    # VMEM budget from the actual block sizes (double-buffered).
    out_itemsize = jnp.dtype(out_dtype).itemsize
    out_block = rpt * lanes * out_itemsize
    in_block = rpt * max(group, 128) * 4          # GROUP lanes padded to 128 in VMEM
    sel_bytes = group * lanes * 2
    off_bytes = 8 * lanes * 4                     # 1 row sublane-padded to 8
    vmem_needed = 2 * (out_block + in_block + sel_bytes + off_bytes)
    vmem_limit = int(min(64 * 1024 * 1024, max(vmem_needed + (4 << 20), 16 << 20)))

    kernel = functools.partial(_gaussian_basis_kernel, gamma=float(gamma))

    cost = pl.CostEstimate(
        flops=(6 * group + 5) * n_pad * g,        # 3 bf16 selector matmuls + VPU math
        transcendentals=n_pad * g,                # one exp per output element
        bytes_accessed=4 * n_pad + out_itemsize * n_pad * g + sel_bytes + 4 * lanes,
    )

    out_slab = pl.pallas_call(
        kernel,
        out_shape=jax.ShapeDtypeStruct((slab_rows, lanes), out_dtype),
        grid_spec=pl.GridSpec(
            grid=(grid_n,),
            in_specs=[
                pl.BlockSpec((rpt, group), lambda i: (i, 0)),     # r slab tile
                pl.BlockSpec((group, lanes), lambda i: (0, 0)),   # selector (resident)
                pl.BlockSpec((1, lanes), lambda i: (0, 0)),       # offsets  (resident)
            ],
            out_specs=pl.BlockSpec((rpt, lanes), lambda i: (i, 0)),
        ),
        compiler_params=pltpu.CompilerParams(
            dimension_semantics=("parallel",),
            vmem_limit_bytes=vmem_limit,
        ),
        cost_estimate=cost,
    )(r_slab, sel, off_row)

    # Same row-major bit layout as (n_pad, G): the reshape is a free bitcast.
    out = out_slab.reshape(n_pad, g)
    if n_pad != n:
        out = out[:n]                             # only the ragged case pays a copy
    return out


def _reference(r, *, start=0.0, stop=5.0, num_gaussians=50):
    # Faithful to the PyTorch module (linspace buffer + python-scalar gamma).
    offset = jnp.linspace(start, stop, num_gaussians, dtype=jnp.float32)
    gamma = -0.5 / float(offset[1] - offset[0]) ** 2
    d = r.reshape(-1, 1).astype(jnp.float32) - offset.reshape(1, -1)
    return jnp.exp(gamma * d * d)


if __name__ == "__main__":
    key = jax.random.PRNGKey(0)

    # Distances in [0, 5) with a typical graph-feature shape (flattens to N=2048:
    # a multiple of GROUP=64, so no output slice; grid_n=2 -> both v7x cores busy).
    r = jax.random.uniform(key, (2, 4, 16, 16), dtype=jnp.float32,
                           minval=0.0, maxval=5.0)
    out = jax.block_until_ready(gaussian_basis_projection(r))
    ref = _reference(r)
    assert out.shape == (2 * 4 * 16 * 16, 50), out.shape
    assert jnp.allclose(out, ref, atol=1e-5, rtol=1e-5), \
        float(jnp.max(jnp.abs(out - ref)))

    # Ragged case: N=120 is not a multiple of GROUP=64 -> exercises input padding
    # and the [:N] slice path.
    r2 = jax.random.uniform(jax.random.PRNGKey(1), (3, 40), dtype=jnp.float32,
                            minval=0.0, maxval=5.0)
    out2 = jax.block_until_ready(gaussian_basis_projection(r2))
    ref2 = _reference(r2)
    assert out2.shape == (3 * 40, 50), out2.shape
    assert jnp.allclose(out2, ref2, atol=1e-5, rtol=1e-5), \
        float(jnp.max(jnp.abs(out2 - ref2)))

    # Optional bf16-output path (v6e/v7x HBM-byte saver); looser tolerance.
    out3 = jax.block_until_ready(
        gaussian_basis_projection(r2, out_dtype=jnp.bfloat16))
    assert out3.shape == (3 * 40, 50), out3.shape
    assert jnp.allclose(out3.astype(jnp.float32), ref2, atol=1e-2, rtol=1e-2), \
        float(jnp.max(jnp.abs(out3.astype(jnp.float32) - ref2)))

    print("KERNEL_OK")
</pallas_src>

<mosaic_0001>
module attributes {stable_mosaic.version = 11 : i64} {
  func.func @_gaussian_basis_kernel(%arg0: i32, %arg1: memref<16x64xf32, #tpu.memory_space<vmem>>, %arg2: memref<64x3200xbf16, #tpu.memory_space<vmem>>, %arg3: memref<1x3200xf32, #tpu.memory_space<vmem>>, %arg4: memref<16x3200xf32, #tpu.memory_space<vmem>>) attributes {dimension_semantics = [#tpu.dimension_semantics<parallel>], iteration_bounds = array<i64: 2>, scalar_prefetch = 0 : i64, scratch_operands = 0 : i64, tpu.core_type = #tpu.core_type<tc>, window_params = [{transform_indices = @transform_0, window_bounds = array<i64: 16, 64>}, {pipeline_mode = #tpu.pipeline_mode<synchronous>, transform_indices = @transform_1, window_bounds = array<i64: 64, 3200>}, {pipeline_mode = #tpu.pipeline_mode<synchronous>, transform_indices = @transform_2, window_bounds = array<i64: 1, 3200>}, {transform_indices = @transform_3, window_bounds = array<i64: 16, 3200>}]} {
    %c0 = arith.constant 0 : index
    %c0_0 = arith.constant 0 : index
    %0 = vector.load %arg1[%c0, %c0_0] : memref<16x64xf32, #tpu.memory_space<vmem>>, vector<16x64xf32>
    %1 = arith.truncf %0 : vector<16x64xf32> to vector<16x64xbf16>
    %2 = arith.extf %1 : vector<16x64xbf16> to vector<16x64xf32>
    %3 = arith.subf %0, %2 : vector<16x64xf32>
    %4 = arith.truncf %3 : vector<16x64xf32> to vector<16x64xbf16>
    %5 = arith.extf %4 : vector<16x64xbf16> to vector<16x64xf32>
    %6 = arith.subf %3, %5 : vector<16x64xf32>
    %7 = arith.truncf %6 : vector<16x64xf32> to vector<16x64xbf16>
    %c0_1 = arith.constant 0 : index
    %c0_2 = arith.constant 0 : index
    %8 = vector.load %arg2[%c0_1, %c0_2] : memref<64x3200xbf16, #tpu.memory_space<vmem>>, vector<64x3200xbf16>
    %cst = arith.constant dense<0.000000e+00> : vector<16x3200xf32>
    %9 = tpu.matmul %1, %8, %cst {dimension_numbers = #tpu.dot_dimension_numbers<[1], [0], [0], [1], [0, 0, 1, 1], [], []>} : vector<16x64xbf16>, vector<64x3200xbf16>, vector<16x3200xf32> -> vector<16x3200xf32>
    %cst_3 = arith.constant dense<0.000000e+00> : vector<16x3200xf32>
    %10 = tpu.matmul %4, %8, %cst_3 {dimension_numbers = #tpu.dot_dimension_numbers<[1], [0], [0], [1], [0, 0, 1, 1], [], []>} : vector<16x64xbf16>, vector<64x3200xbf16>, vector<16x3200xf32> -> vector<16x3200xf32>
    %11 = arith.addf %9, %10 : vector<16x3200xf32>
    %cst_4 = arith.constant dense<0.000000e+00> : vector<16x3200xf32>
    %12 = tpu.matmul %7, %8, %cst_4 {dimension_numbers = #tpu.dot_dimension_numbers<[1], [0], [0], [1], [0, 0, 1, 1], [], []>} : vector<16x64xbf16>, vector<64x3200xbf16>, vector<16x3200xf32> -> vector<16x3200xf32>
    %13 = arith.addf %11, %12 : vector<16x3200xf32>
    %c0_5 = arith.constant 0 : index
    %c0_6 = arith.constant 0 : index
    %14 = vector.load %arg3[%c0_5, %c0_6] : memref<1x3200xf32, #tpu.memory_space<vmem>>, vector<1x3200xf32>
    %15 = vector.broadcast %14 : vector<1x3200xf32> to vector<16x3200xf32>
    %16 = arith.subf %13, %15 : vector<16x3200xf32>
    %17 = arith.mulf %16, %16 : vector<16x3200xf32>
    %cst_7 = arith.constant -4.802000e+01 : f32
    %18 = vector.broadcast %cst_7 : f32 to vector<16x3200xf32>
    %19 = arith.mulf %18, %17 : vector<16x3200xf32>
    %20 = math.exp %19 : vector<16x3200xf32>
    %c0_8 = arith.constant 0 : index
    %c0_9 = arith.constant 0 : index
    %21 = vector.load %arg4[%c0_8, %c0_9] : memref<16x3200xf32, #tpu.memory_space<vmem>>, vector<16x3200xf32>
    tpu.vector_store %arg4[%c0_8, %c0_9], %20 {strides = array<i32>} : memref<16x3200xf32, #tpu.memory_space<vmem>>, vector<16x3200xf32>,
    return
  }
  func.func @transform_0(%arg0: i32) -> (i32, i32) {
    %c0_i32 = arith.constant 0 : i32
    %c0_i32_0 = arith.constant 0 : i32
    return %arg0, %c0_i32 : i32, i32
  }
  func.func @transform_1(%arg0: i32) -> (i32, i32) {
    %c0_i32 = arith.constant 0 : i32
    %c0_i32_0 = arith.constant 0 : i32
    %c0_i32_1 = arith.constant 0 : i32
    return %c0_i32, %c0_i32_0 : i32, i32
  }
  func.func @transform_2(%arg0: i32) -> (i32, i32) {
    %c0_i32 = arith.constant 0 : i32
    %c0_i32_0 = arith.constant 0 : i32
    %c0_i32_1 = arith.constant 0 : i32
    return %c0_i32, %c0_i32_0 : i32, i32
  }
  func.func @transform_3(%arg0: i32) -> (i32, i32) {
    %c0_i32 = arith.constant 0 : i32
    %c0_i32_0 = arith.constant 0 : i32
    return %arg0, %c0_i32 : i32, i32
  }
}

</mosaic_0001>

<llo_original>
// kernel: tpu_custom_call.1
$region0: #{tpu_custom_call.1}
  #allocation0 [shape = 'u32[]', space=smem, size = 0x4, offset = 0x4, fixed_abs, tag = 'smem constant byte address 0x4 - core index']
  #allocation1 [shape = 'u32[144,128]{1,0:T(1,128)}', space=vmem, size = 0x12000, scoped, tag = 'internal scratch']
  %s0 = inlined_call_operand.hbm [shape: f32[32,64], index: 0, kind: input, shape index: {}]
  %s1 = inlined_call_operand.hbm [shape: bf16[64,3200], index: 1, kind: input, shape index: {}]
  %s2 = inlined_call_operand.hbm [shape: f32[1,3200], index: 2, kind: input, shape index: {}]
  %s3 = inlined_call_operand.hbm [shape: f32[32,3200], index: 3, kind: output, shape index: {}]
  %s4 = sld [smem:[#allocation0]]
  $region57: #{tpu_custom_call.1} parent=0
    _
  %s6 = ssub.s32 1, %s4
  %s7 = scalar_select 0, %s6, %s4
  $region1: #{tpu_custom_call.1} parent=0
    #allocation2 [shape = 'u8[16384]{0}', space=vmem, size = 0x4000, scoped, tag = 'input window, operand 0']
    #allocation3 [shape = 's32[2]{0}', space=sflag, size = 0x8, scoped, tag = 'scoped memory for tpu_custom_call.1']
    #allocation4 [shape = 's32[2]{0}', space=sflag, size = 0x8, scoped, tag = 'scoped memory for tpu_custom_call.1']
    #allocation5 [shape = 'u8[409600]{0}', space=vmem, size = 0x64000, scoped, tag = 'input window, operand 1, single buffered']
    #allocation6 [shape = 's32[1]{0}', space=sflag, size = 0x4, scoped, tag = 'scoped memory for tpu_custom_call.1']
    #allocation7 [shape = 'u8[12800]{0}', space=vmem, size = 0x3400, scoped, tag = 'input window, operand 2, single buffered']
    #allocation8 [shape = 'u8[409600]{0}', space=vmem, size = 0x64000, scoped, tag = 'output window, operand 0']
    %8 = vsyncpa [#allocation3], 0
    %s9 = scalar_lea.sflag [#allocation3], 1
    %10 = vsyncpa %s9, 0
    %11 = vsyncpa [#allocation6], 0
    %12 = vsyncpa [#allocation4], 0
    %s13 = scalar_lea.sflag [#allocation4], 1
    %14 = vsyncpa %s13, 0
    loop: start=0, step=1, limit=4
    $region2: #{tpu_custom_call.1} parent=1 // loop_pre_header
      _
    $region3: #{tpu_custom_call.1} parent=1 // loop_header
      %s16 = sphi 0, %s20
      %p17 = scmp.ge.s32.totalorder %s16, 4
      %s26 = sphi 0, %s28
      %s29 = sphi 0, %s26
      %s30 = sphi 0, %s29
      %s46 = sphi 0, %s30
      %s50 = sphi 0, %s50
      %s52 = sphi 0, %s50
      %s53 = sphi 0, %s52
      %s67 = sphi 0, %s53
      %s71 = sphi 0, %s71
      %s73 = sphi 0, %s71
      %s74 = sphi 0, %s73
      %s88 = sphi 0, %s74
      %s94 = sphi 0, %s96
      %s97 = sphi 0, %s94
      %s98 = sphi 0, %s97
      %s114 = sphi 0, %s98
    $region4: #{tpu_custom_call.1} parent=1 // loop_header_branch
      %19 = sbr.rel (%p17) target = $region8
    $region5: #{tpu_custom_call.1} parent=1 // loop_body
      %s21 = ssub.s32 %s16, 1
      %s22 = ssub.s32 %s16, 2
      %s23 = sadd.s32 %s16, 1
      %s24 = ssub.s32 %s16, %s23
      %p25 = scmp.eq.s32.totalorder %s24, 0
      %s27 = sadd.s32 %s26, 1
      %s28 = scalar_select %p25, %s26, %s27
      %p31 = pneg %p25
      %p32 = scmp.eq.s32.totalorder %s16, 1
      %p33 = por %p31, %p32
      %p34 = scmp.ne.s32.totalorder %s26, %s29
      %p35 = scmp.eq.s32.totalorder %s16, 0
      %p36 = por %p34, %p35
      %p37 = scmp.ne.s32.totalorder %s26, %s29
      %p38 = scmp.eq.s32.totalorder %s21, 1
      %p39 = por %p37, %p38
      %p40 = scmp.ne.s32.totalorder %s29, %s30
      %p41 = scmp.eq.s32.totalorder %s21, 0
      %p42 = por %p40, %p41
      %p43 = scmp.ne.s32.totalorder %s29, %s30
      %p44 = scmp.eq.s32.totalorder %s22, 1
      %p45 = por %p43, %p44
      %p47 = scmp.ne.s32.totalorder %s30, %s46
      %p48 = scmp.eq.s32.totalorder %s22, 0
      %p49 = por %p47, %p48
      %s51 = sadd.s32 %s50, 1
      %p54 = scmp.eq.s32.totalorder %s16, 1
      %p55 = scmp.ne.s32.totalorder %s50, %s52
      %p56 = scmp.eq.s32.totalorder %s16, 0
      %p57 = por %p55, %p56
      %p58 = scmp.ne.s32.totalorder %s50, %s52
      %p59 = scmp.eq.s32.totalorder %s21, 1
      %p60 = por %p58, %p59
      %p61 = scmp.ne.s32.totalorder %s52, %s53
      %p62 = scmp.eq.s32.totalorder %s21, 0
      %p63 = por %p61, %p62
      %p64 = scmp.ne.s32.totalorder %s52, %s53
      %p65 = scmp.eq.s32.totalorder %s22, 1
      %p66 = por %p64, %p65
      %p68 = scmp.ne.s32.totalorder %s53, %s67
      %p69 = scmp.eq.s32.totalorder %s22, 0
      %p70 = por %p68, %p69
      %s72 = sadd.s32 %s71, 1
      %p75 = scmp.eq.s32.totalorder %s16, 1
      %p76 = scmp.ne.s32.totalorder %s71, %s73
      %p77 = scmp.eq.s32.totalorder %s16, 0
      %p78 = por %p76, %p77
      %p79 = scmp.ne.s32.totalorder %s71, %s73
      %p80 = scmp.eq.s32.totalorder %s21, 1
      %p81 = por %p79, %p80
      %p82 = scmp.ne.s32.totalorder %s73, %s74
      %p83 = scmp.eq.s32.totalorder %s21, 0
      %p84 = por %p82, %p83
      %p85 = scmp.ne.s32.totalorder %s73, %s74
      %p86 = scmp.eq.s32.totalorder %s22, 1
      %p87 = por %p85, %p86
      %p89 = scmp.ne.s32.totalorder %s74, %s88
      %p90 = scmp.eq.s32.totalorder %s22, 0
      %p91 = por %p89, %p90
      %s92 = ssub.s32 %s16, %s23
      %p93 = scmp.eq.s32.totalorder %s92, 0
      %s95 = sadd.s32 %s94, 1
      %s96 = scalar_select %p93, %s94, %s95
      %p99 = pneg %p93
      %p100 = scmp.eq.s32.totalorder %s16, 1
      %p101 = por %p99, %p100
      %p102 = scmp.ne.s32.totalorder %s94, %s97
      %p103 = scmp.eq.s32.totalorder %s16, 0
      %p104 = por %p102, %p103
      %p105 = scmp.ne.s32.totalorder %s94, %s97
      %p106 = scmp.eq.s32.totalorder %s21, 1
      %p107 = por %p105, %p106
      %p108 = scmp.ne.s32.totalorder %s97, %s98
      %p109 = scmp.eq.s32.totalorder %s21, 0
      %p110 = por %p108, %p109
      %p111 = scmp.ne.s32.totalorder %s97, %s98
      %p112 = scmp.eq.s32.totalorder %s22, 1
      %p113 = por %p111, %p112
      %p115 = scmp.ne.s32.totalorder %s98, %s114
      %p116 = scmp.eq.s32.totalorder %s22, 0
      %p117 = por %p115, %p116
      %p118 = scmp.le.s32.totalorder 1, %s16
      %p119 = scmp.lt.s32.totalorder %s16, 3
      %p120 = pnand %p118, %p119
      %p121 = pneg %p120
      // Predicated region
      $region9: #{tpu_custom_call.1} parent=5 // pred_check
        _
      $region10: #{tpu_custom_call.1} parent=5 // pred_check_branch
        %123 = sbr.rel (%p120) target = $region12
      $region11: #{tpu_custom_call.1} parent=5 // pred_region
        %s124 = ssub.s32 %s16, 1
        // Predicated region
        $region13: #{tpu_custom_call.1} parent=11 // pred_check
          %p125 = pneg %p63
        $region14: #{tpu_custom_call.1} parent=11 // pred_check_branch
          %127 = sbr.rel (%p125) target = $region16
        $region15: #{tpu_custom_call.1} parent=11 // pred_region
          %s129 = ssub.s32 12800, 12800
          %130 = vsyncadd [#allocation6], %s129
          %s131 = sshll.u32 [#allocation5], 4
          %s132 = int_to_ptr.vmem [resolvable:$true] %s131
          %137 = dma.hbm_to_vmem [thread:$0]  %s1, 12800, %s132, [#allocation6], 1600, 1600, 100
        $region16: #{tpu_custom_call.1} parent=11 // pred_fallthru
          _
        // Predicated region
        $region17: #{tpu_custom_call.1} parent=11 // pred_check
          %p138 = pneg %p84
        $region18: #{tpu_custom_call.1} parent=11 // pred_check_branch
          %140 = sbr.rel (%p138) target = $region20
        $region19: #{tpu_custom_call.1} parent=11 // pred_region
          %s142 = ssub.s32 400, 400
          %143 = vsyncadd [#allocation6], %s142
          %s145 = sshll.u32 [#allocation7], 4
          %s146 = int_to_ptr.vmem [resolvable:$true] %s145
          %148 = dma.hbm_to_vmem [thread:$0]  %s2, 400, %s146, [#allocation6]
        $region20: #{tpu_custom_call.1} parent=11 // pred_fallthru
          _
      $region12: #{tpu_custom_call.1} parent=5 // pred_fallthru
        _
      %p149 = scmp.lt.s32.totalorder %s16, 2
      // Predicated region
      $region21: #{tpu_custom_call.1} parent=5 // pred_check
        %p150 = pneg %p149
      $region22: #{tpu_custom_call.1} parent=5 // pred_check_branch
        %152 = sbr.rel (%p150) target = $region24
      $region23: #{tpu_custom_call.1} parent=5 // pred_region
        // Predicated region
        $region25: #{tpu_custom_call.1} parent=23 // pred_check
          %p153 = pneg %p36
        $region26: #{tpu_custom_call.1} parent=23 // pred_check_branch
          %155 = sbr.rel (%p153) target = $region28
        $region27: #{tpu_custom_call.1} parent=23 // pred_region
          %s156 = sand.u32 %s26, 1
          %s157 = scalar_lea.sflag [#allocation3], %s156
          %s158 = sand.u32 %s26, 1
          %s159 = smul.addr %s158, 16
          %s160 = scalar_lea.vmem [#allocation2], %s159
          %s161 = smul.u32 2, %s16
          %s163 = ssub.s32 256, 256
          %164 = vsyncadd %s157, %s163
          %s165 = smul.addr %s161, 128
          %s166 = scalar_lea.hbm %s0, %s165
          %s167 = sshll.u32 %s160, 4
          %s168 = int_to_ptr.vmem [resolvable:$true] %s167
          %173 = dma.hbm_to_vmem [thread:$0]  %s166, 256, %s168, %s157, 128, 128, 8
        $region28: #{tpu_custom_call.1} parent=23 // pred_fallthru
          _
      $region24: #{tpu_custom_call.1} parent=5 // pred_fallthru
        _
      %p174 = scmp.le.s32.totalorder 1, %s16
      %p175 = scmp.lt.s32.totalorder %s16, 3
      %p176 = pnand %p174, %p175
      %p177 = pneg %p176
      // Predicated region
      $region29: #{tpu_custom_call.1} parent=5 // pred_check
        _
      $region30: #{tpu_custom_call.1} parent=5 // pred_check_branch
        %179 = sbr.rel (%p176) target = $region32
      $region31: #{tpu_custom_call.1} parent=5 // pred_region
        %s180 = ssub.s32 %s16, 1
        %s181 = sand.u32 %s29, 1
        %s182 = scalar_lea.sflag [#allocation3], %s181
        %s183 = sand.u32 %s29, 1
        %s184 = smul.addr %s183, 16
        %s185 = scalar_lea.vmem [#allocation2], %s184
        // Predicated region
        $region33: #{tpu_custom_call.1} parent=31 // pred_check
          %p186 = pneg %p42
        $region34: #{tpu_custom_call.1} parent=31 // pred_check_branch
          %188 = sbr.rel (%p186) target = $region36
        $region35: #{tpu_custom_call.1} parent=31 // pred_region
          %189 = dma.done %s182, 256
        $region36: #{tpu_custom_call.1} parent=31 // pred_fallthru
          _
        // Predicated region
        $region37: #{tpu_custom_call.1} parent=31 // pred_check
          %p190 = pneg %p63
        $region38: #{tpu_custom_call.1} parent=31 // pred_check_branch
          %192 = sbr.rel (%p190) target = $region40
        $region39: #{tpu_custom_call.1} parent=31 // pred_region
          %193 = dma.done [#allocation6], 12800
        $region40: #{tpu_custom_call.1} parent=31 // pred_fallthru
          _
        // Predicated region
        $region41: #{tpu_custom_call.1} parent=31 // pred_check
          %p194 = pneg %p84
        $region42: #{tpu_custom_call.1} parent=31 // pred_check_branch
          %196 = sbr.rel (%p194) target = $region44
        $region43: #{tpu_custom_call.1} parent=31 // pred_region
          %197 = dma.done [#allocation6], 400
        $region44: #{tpu_custom_call.1} parent=31 // pred_fallthru
          _
        %s198 = sand.u32 %s29, 1
        %s199 = scalar_lea.sflag [#allocation3], %s198
        %s200 = sand.u32 %s29, 1
        %s201 = smul.addr %s200, 16
        %s202 = scalar_lea.vmem [#allocation2], %s201
        %p203 = pneg %p42
        %p204 = pneg %p39
        %p205 = pneg %p63
        %p206 = pneg %p60
        %p207 = pneg %p84
        %p208 = pneg %p81
        %p209 = pneg %p110
        %p210 = pneg %p107
        %s211 = sand.u32 %s97, 1
        %s212 = scalar_lea.sflag [#allocation4], %s211
        %s213 = sand.u32 %s97, 1
        %s214 = smul.addr %s213, 400
        %s215 = scalar_lea.vmem [#allocation8], %s214
        %s216 = smul.u32 2, %s21
        %s217 = smul.u32 2, %s21
        %v219 = vld [vmem:[%s185] sm:$0xff]
        %v220 = vld [vmem:[%s185 + $0x8] sm:$0xff]
        %v221 = vpack.c.bf16 %v220, %v219
        %v222 = vunpack.c.l.bf16 %v221
        %v223 = vunpack.c.h.bf16 %v221
        %v224 = vsub.f32 %v219, %v222
        %v225 = vsub.f32 %v220, %v223
        %v226 = vpack.c.bf16 %v225, %v224
        %v227 = vunpack.c.l.bf16 %v226
        %v228 = vunpack.c.h.bf16 %v226
        %v229 = vsub.f32 %v224, %v227
        %v230 = vsub.f32 %v225, %v228
        %v231 = vpack.c.bf16 %v230, %v229
        %v232 = vld [vmem:[#allocation5] sm:$0xff]
        %v233 = vld [vmem:[#allocation5 + $0x8] sm:$0xff]
        %v234 = vld [vmem:[#allocation5 + $0x10] sm:$0xff]
        %v235 = vld [vmem:[#allocation5 + $0x18] sm:$0xff]
        %v236 = vld [vmem:[#allocation5 + $0x20] sm:$0xff]
        %v237 = vld [vmem:[#allocation5 + $0x28] sm:$0xff]
        %v238 = vld [vmem:[#allocation5 + $0x30] sm:$0xff]
        %v239 = vld [vmem:[#allocation5 + $0x38] sm:$0xff]
        %v240 = vld [vmem:[#allocation5 + $0x40] sm:$0xff]
        %v241 = vld [vmem:[#allocation5 + $0x48] sm:$0xff]
        %v242 = vld [vmem:[#allocation5 + $0x50] sm:$0xff]
        %v243 = vld [vmem:[#allocation5 + $0x58] sm:$0xff]
        %v244 = vld [vmem:[#allocation5 + $0x60] sm:$0xf]
        %v245 = vld [vmem:[#allocation5 + $0x64] sm:$0xff]
        %v246 = vld [vmem:[#allocation5 + $0x6c] sm:$0xff]
        %v247 = vld [vmem:[#allocation5 + $0x74] sm:$0xff]
        %v248 = vld [vmem:[#allocation5 + $0x7c] sm:$0xff]
        %v249 = vld [vmem:[#allocation5 + $0x84] sm:$0xff]
        %v250 = vld [vmem:[#allocation5 + $0x8c] sm:$0xff]
        %v251 = vld [vmem:[#allocation5 + $0x94] sm:$0xff]
        %v252 = vld [vmem:[#allocation5 + $0x9c] sm:$0xff]
        %v253 = vld [vmem:[#allocation5 + $0xa4] sm:$0xff]
        %v254 = vld [vmem:[#allocation5 + $0xac] sm:$0xff]
        %v255 = vld [vmem:[#allocation5 + $0xb4] sm:$0xff]
        %v256 = vld [vmem:[#allocation5 + $0xbc] sm:$0xff]
        %v257 = vld [vmem:[#allocation5 + $0xc4] sm:$0xf]
        %v258 = vld [vmem:[#allocation5 + $0xc8] sm:$0xff]
        %v259 = vld [vmem:[#allocation5 + $0xd0] sm:$0xff]
        %v260 = vld [vmem:[#allocation5 + $0xd8] sm:$0xff]
        %v261 = vld [vmem:[#allocation5 + $0xe0] sm:$0xff]
        %v262 = vld [vmem:[#allocation5 + $0xe8] sm:$0xff]
        %v263 = vld [vmem:[#allocation5 + $0xf0] sm:$0xff]
        %v264 = vld [vmem:[#allocation5 + $0xf8] sm:$0xff]
        %v265 = vld [vmem:[#allocation5 + $0x100] sm:$0xff]
        %v266 = vld [vmem:[#allocation5 + $0x108] sm:$0xff]
        %v267 = vld [vmem:[#allocation5 + $0x110] sm:$0xff]
        %v268 = vld [vmem:[#allocation5 + $0x118] sm:$0xff]
        %v269 = vld [vmem:[#allocation5 + $0x120] sm:$0xff]
        %v270 = vld [vmem:[#allocation5 + $0x128] sm:$0xf]
        %v271 = vld [vmem:[#allocation5 + $0x12c] sm:$0xff]
        %v272 = vld [vmem:[#allocation5 + $0x134] sm:$0xff]
        %v273 = vld [vmem:[#allocation5 + $0x13c] sm:$0xff]
        %v274 = vld [vmem:[#allocation5 + $0x144] sm:$0xff]
        %v275 = vld [vmem:[#allocation5 + $0x14c] sm:$0xff]
        %v276 = vld [vmem:[#allocation5 + $0x154] sm:$0xff]
        %v277 = vld [vmem:[#allocation5 + $0x15c] sm:$0xff]
        %v278 = vld [vmem:[#allocation5 + $0x164] sm:$0xff]
        %v279 = vld [vmem:[#allocation5 + $0x16c] sm:$0xff]
        %v280 = vld [vmem:[#allocation5 + $0x174] sm:$0xff]
        %v281 = vld [vmem:[#allocation5 + $0x17c] sm:$0xff]
        %v282 = vld [vmem:[#allocation5 + $0x184] sm:$0xff]
        %v283 = vld [vmem:[#allocation5 + $0x18c] sm:$0xf]
        %v284 = vld [vmem:[#allocation5 + $0x190] sm:$0xff]
        %v285 = vld [vmem:[#allocation5 + $0x198] sm:$0xff]
        %v286 = vld [vmem:[#allocation5 + $0x1a0] sm:$0xff]
        %v287 = vld [vmem:[#allocation5 + $0x1a8] sm:$0xff]
        %v288 = vld [vmem:[#allocation5 + $0x1b0] sm:$0xff]
        %v289 = vld [vmem:[#allocation5 + $0x1b8] sm:$0xff]
        %v290 = vld [vmem:[#allocation5 + $0x1c0] sm:$0xff]
        %v291 = vld [vmem:[#allocation5 + $0x1c8] sm:$0xff]
        %v292 = vld [vmem:[#allocation5 + $0x1d0] sm:$0xff]
        %v293 = vld [vmem:[#allocation5 + $0x1d8] sm:$0xff]
        %v294 = vld [vmem:[#allocation5 + $0x1e0] sm:$0xff]
        %v295 = vld [vmem:[#allocation5 + $0x1e8] sm:$0xff]
        %v296 = vld [vmem:[#allocation5 + $0x1f0] sm:$0xf]
        %v297 = vld [vmem:[#allocation5 + $0x1f4] sm:$0xff]
        %v298 = vld [vmem:[#allocation5 + $0x1fc] sm:$0xff]
        %v299 = vld [vmem:[#allocation5 + $0x204] sm:$0xff]
        %v300 = vld [vmem:[#allocation5 + $0x20c] sm:$0xff]
        %v301 = vld [vmem:[#allocation5 + $0x214] sm:$0xff]
        %v302 = vld [vmem:[#allocation5 + $0x21c] sm:$0xff]
        %v303 = vld [vmem:[#allocation5 + $0x224] sm:$0xff]
        %v304 = vld [vmem:[#allocation5 + $0x22c] sm:$0xff]
        %v305 = vld [vmem:[#allocation5 + $0x234] sm:$0xff]
        %v306 = vld [vmem:[#allocation5 + $0x23c] sm:$0xff]
        %v307 = vld [vmem:[#allocation5 + $0x244] sm:$0xff]
        %v308 = vld [vmem:[#allocation5 + $0x24c] sm:$0xff]
        %v309 = vld [vmem:[#allocation5 + $0x254] sm:$0xf]
        %v310 = vld [vmem:[#allocation5 + $0x258] sm:$0xff]
        %v311 = vld [vmem:[#allocation5 + $0x260] sm:$0xff]
        %v312 = vld [vmem:[#allocation5 + $0x268] sm:$0xff]
        %v313 = vld [vmem:[#allocation5 + $0x270] sm:$0xff]
        %v314 = vld [vmem:[#allocation5 + $0x278] sm:$0xff]
        %v315 = vld [vmem:[#allocation5 + $0x280] sm:$0xff]
        %v316 = vld [vmem:[#allocation5 + $0x288] sm:$0xff]
        %v317 = vld [vmem:[#allocation5 + $0x290] sm:$0xff]
        %v318 = vld [vmem:[#allocation5 + $0x298] sm:$0xff]
        %v319 = vld [vmem:[#allocation5 + $0x2a0] sm:$0xff]
        %v320 = vld [vmem:[#allocation5 + $0x2a8] sm:$0xff]
        %v321 = vld [vmem:[#allocation5 + $0x2b0] sm:$0xff]
        %v322 = vld [vmem:[#allocation5 + $0x2b8] sm:$0xf]
        %v323 = vld [vmem:[#allocation5 + $0x2bc] sm:$0xff]
        %v324 = vld [vmem:[#allocation5 + $0x2c4] sm:$0xff]
        %v325 = vld [vmem:[#allocation5 + $0x2cc] sm:$0xff]
        %v326 = vld [vmem:[#allocation5 + $0x2d4] sm:$0xff]
        %v327 = vld [vmem:[#allocation5 + $0x2dc] sm:$0xff]
        %v328 = vld [vmem:[#allocation5 + $0x2e4] sm:$0xff]
        %v329 = vld [vmem:[#allocation5 + $0x2ec] sm:$0xff]
        %v330 = vld [vmem:[#allocation5 + $0x2f4] sm:$0xff]
        %v331 = vld [vmem:[#allocation5 + $0x2fc] sm:$0xff]
        %v332 = vld [vmem:[#allocation5 + $0x304] sm:$0xff]
        %v333 = vld [vmem:[#allocation5 + $0x30c] sm:$0xff]
        %v334 = vld [vmem:[#allocation5 + $0x314] sm:$0xff]
        %v335 = vld [vmem:[#allocation5 + $0x31c] sm:$0xf]
        %v440 = vunpack.c.l.b16 %v232
        %v441 = vunpack.c.h.b16 %v232
        %v442 = vunpack.c.l.b16 %v233
        %v443 = vunpack.c.h.b16 %v233
        %v444 = vunpack.c.l.b16 %v234
        %v445 = vunpack.c.h.b16 %v234
        %v446 = vunpack.c.l.b16 %v235
        %v447 = vunpack.c.h.b16 %v235
        %v448 = vunpack.c.l.b16 %v236
        %v449 = vunpack.c.h.b16 %v236
        %v450 = vunpack.c.l.b16 %v237
        %v451 = vunpack.c.h.b16 %v237
        %v452 = vunpack.c.l.b16 %v238
        %v453 = vunpack.c.h.b16 %v238
        %v454 = vunpack.c.l.b16 %v239
        %v455 = vunpack.c.h.b16 %v239
        %v456 = vunpack.c.l.b16 %v240
        %v457 = vunpack.c.h.b16 %v240
        %v458 = vunpack.c.l.b16 %v241
        %v459 = vunpack.c.h.b16 %v241
        %v460 = vunpack.c.l.b16 %v242
        %v461 = vunpack.c.h.b16 %v242
        %v462 = vunpack.c.l.b16 %v243
        %v463 = vunpack.c.h.b16 %v243
        %v464 = vunpack.c.l.b16 %v244
        %v465 = vunpack.c.l.b16 %v245
        %v466 = vunpack.c.h.b16 %v245
        %v467 = vunpack.c.l.b16 %v246
        %v468 = vunpack.c.h.b16 %v246
        %v469 = vunpack.c.l.b16 %v247
        %v470 = vunpack.c.h.b16 %v247
        %v471 = vunpack.c.l.b16 %v248
        %v472 = vunpack.c.h.b16 %v248
        %v473 = vunpack.c.l.b16 %v249
        %v474 = vunpack.c.h.b16 %v249
        %v475 = vunpack.c.l.b16 %v250
        %v476 = vunpack.c.h.b16 %v250
        %v477 = vunpack.c.l.b16 %v251
        %v478 = vunpack.c.h.b16 %v251
        %v479 = vunpack.c.l.b16 %v252
        %v480 = vunpack.c.h.b16 %v252
        %v481 = vunpack.c.l.b16 %v253
        %v482 = vunpack.c.h.b16 %v253
        %v483 = vunpack.c.l.b16 %v254
        %v484 = vunpack.c.h.b16 %v254
        %v485 = vunpack.c.l.b16 %v255
        %v486 = vunpack.c.h.b16 %v255
        %v487 = vunpack.c.l.b16 %v256
        %v488 = vunpack.c.h.b16 %v256
        %v489 = vunpack.c.l.b16 %v257
        %v490 = vunpack.c.l.b16 %v258
        %v491 = vunpack.c.h.b16 %v258
        %v492 = vunpack.c.l.b16 %v259
        %v493 = vunpack.c.h.b16 %v259
        %v494 = vunpack.c.l.b16 %v260
        %v495 = vunpack.c.h.b16 %v260
        %v496 = vunpack.c.l.b16 %v261
        %v497 = vunpack.c.h.b16 %v261
        %v498 = vunpack.c.l.b16 %v262
        %v499 = vunpack.c.h.b16 %v262
        %v500 = vunpack.c.l.b16 %v263
        %v501 = vunpack.c.h.b16 %v263
        %v502 = vunpack.c.l.b16 %v264
        %v503 = vunpack.c.h.b16 %v264
        %v504 = vunpack.c.l.b16 %v265
        %v505 = vunpack.c.h.b16 %v265
        %v506 = vunpack.c.l.b16 %v266
        %v507 = vunpack.c.h.b16 %v266
        %v508 = vunpack.c.l.b16 %v267
        %v509 = vunpack.c.h.b16 %v267
        %v510 = vunpack.c.l.b16 %v268
        %v511 = vunpack.c.h.b16 %v268
        %v512 = vunpack.c.l.b16 %v269
        %v513 = vunpack.c.h.b16 %v269
        %v514 = vunpack.c.l.b16 %v270
        %v515 = vunpack.c.l.b16 %v271
        %v516 = vunpack.c.h.b16 %v271
        %v517 = vunpack.c.l.b16 %v272
        %v518 = vunpack.c.h.b16 %v272
        %v519 = vunpack.c.l.b16 %v273
        %v520 = vunpack.c.h.b16 %v273
        %v521 = vunpack.c.l.b16 %v274
        %v522 = vunpack.c.h.b16 %v274
        %v523 = vunpack.c.l.b16 %v275
        %v524 = vunpack.c.h.b16 %v275
        %v525 = vunpack.c.l.b16 %v276
        %v526 = vunpack.c.h.b16 %v276
        %v527 = vunpack.c.l.b16 %v277
        %v528 = vunpack.c.h.b16 %v277
        %v529 = vunpack.c.l.b16 %v278
        %v530 = vunpack.c.h.b16 %v278
        %v531 = vunpack.c.l.b16 %v279
        %v532 = vunpack.c.h.b16 %v279
        %v533 = vunpack.c.l.b16 %v280
        %v534 = vunpack.c.h.b16 %v280
        %v535 = vunpack.c.l.b16 %v281
        %v536 = vunpack.c.h.b16 %v281
        %v537 = vunpack.c.l.b16 %v282
        %v538 = vunpack.c.h.b16 %v282
        %v539 = vunpack.c.l.b16 %v283
        %v540 = vunpack.c.l.b16 %v284
        %v541 = vunpack.c.h.b16 %v284
        %v542 = vunpack.c.l.b16 %v285
        %v543 = vunpack.c.h.b16 %v285
        %v544 = vunpack.c.l.b16 %v286
        %v545 = vunpack.c.h.b16 %v286
        %v546 = vunpack.c.l.b16 %v287
        %v547 = vunpack.c.h.b16 %v287
        %v548 = vunpack.c.l.b16 %v288
        %v549 = vunpack.c.h.b16 %v288
        %v550 = vunpack.c.l.b16 %v289
        %v551 = vunpack.c.h.b16 %v289
        %v552 = vunpack.c.l.b16 %v290
        %v553 = vunpack.c.h.b16 %v290
        %v554 = vunpack.c.l.b16 %v291
        %v555 = vunpack.c.h.b16 %v291
        %v556 = vunpack.c.l.b16 %v292
        %v557 = vunpack.c.h.b16 %v292
        %v558 = vunpack.c.l.b16 %v293
        %v559 = vunpack.c.h.b16 %v293
        %v560 = vunpack.c.l.b16 %v294
        %v561 = vunpack.c.h.b16 %v294
        %v562 = vunpack.c.l.b16 %v295
        %v563 = vunpack.c.h.b16 %v295
        %v564 = vunpack.c.l.b16 %v296
        %v565 = vunpack.c.l.b16 %v297
        %v566 = vunpack.c.h.b16 %v297
        %v567 = vunpack.c.l.b16 %v298
        %v568 = vunpack.c.h.b16 %v298
        %v569 = vunpack.c.l.b16 %v299
        %v570 = vunpack.c.h.b16 %v299
        %v571 = vunpack.c.l.b16 %v300
        %v572 = vunpack.c.h.b16 %v300
        %v573 = vunpack.c.l.b16 %v301
        %v574 = vunpack.c.h.b16 %v301
        %v575 = vunpack.c.l.b16 %v302
        %v576 = vunpack.c.h.b16 %v302
        %v577 = vunpack.c.l.b16 %v303
        %v578 = vunpack.c.h.b16 %v303
        %v579 = vunpack.c.l.b16 %v304
        %v580 = vunpack.c.h.b16 %v304
        %v581 = vunpack.c.l.b16 %v305
        %v582 = vunpack.c.h.b16 %v305
        %v583 = vunpack.c.l.b16 %v306
        %v584 = vunpack.c.h.b16 %v306
        %v585 = vunpack.c.l.b16 %v307
        %v586 = vunpack.c.h.b16 %v307
        %v587 = vunpack.c.l.b16 %v308
        %v588 = vunpack.c.h.b16 %v308
        %v589 = vunpack.c.l.b16 %v309
        %v590 = vunpack.c.l.b16 %v310
        %v591 = vunpack.c.h.b16 %v310
        %v592 = vunpack.c.l.b16 %v311
        %v593 = vunpack.c.h.b16 %v311
        %v594 = vunpack.c.l.b16 %v312
        %v595 = vunpack.c.h.b16 %v312
        %v596 = vunpack.c.l.b16 %v313
        %v597 = vunpack.c.h.b16 %v313
        %v598 = vunpack.c.l.b16 %v314
        %v599 = vunpack.c.h.b16 %v314
        %v600 = vunpack.c.l.b16 %v315
        %v601 = vunpack.c.h.b16 %v315
        %v602 = vunpack.c.l.b16 %v316
        %v603 = vunpack.c.h.b16 %v316
        %v604 = vunpack.c.l.b16 %v317
        %v605 = vunpack.c.h.b16 %v317
        %v606 = vunpack.c.l.b16 %v318
        %v607 = vunpack.c.h.b16 %v318
        %v608 = vunpack.c.l.b16 %v319
        %v609 = vunpack.c.h.b16 %v319
        %v610 = vunpack.c.l.b16 %v320
        %v611 = vunpack.c.h.b16 %v320
        %v612 = vunpack.c.l.b16 %v321
        %v613 = vunpack.c.h.b16 %v321
        %v614 = vunpack.c.l.b16 %v322
        %v615 = vunpack.c.l.b16 %v323
        %v616 = vunpack.c.h.b16 %v323
        %v617 = vunpack.c.l.b16 %v324
        %v618 = vunpack.c.h.b16 %v324
        %v619 = vunpack.c.l.b16 %v325
        %v620 = vunpack.c.h.b16 %v325
        %v621 = vunpack.c.l.b16 %v326
        %v622 = vunpack.c.h.b16 %v326
        %v623 = vunpack.c.l.b16 %v327
        %v624 = vunpack.c.h.b16 %v327
        %v625 = vunpack.c.l.b16 %v328
        %v626 = vunpack.c.h.b16 %v328
        %v627 = vunpack.c.l.b16 %v329
        %v628 = vunpack.c.h.b16 %v329
        %v629 = vunpack.c.l.b16 %v330
        %v630 = vunpack.c.h.b16 %v330
        %v631 = vunpack.c.l.b16 %v331
        %v632 = vunpack.c.h.b16 %v331
        %v633 = vunpack.c.l.b16 %v332
        %v634 = vunpack.c.h.b16 %v332
        %v635 = vunpack.c.l.b16 %v333
        %v636 = vunpack.c.h.b16 %v333
        %v637 = vunpack.c.l.b16 %v334
        %v638 = vunpack.c.h.b16 %v334
        %v639 = vunpack.c.l.b16 %v335
        %v640 = vpack.c.b16 %v465, %v440
        %v641 = vpack.c.b16 %v466, %v441
        %v642 = vpack.c.b16 %v467, %v442
        %v643 = vpack.c.b16 %v468, %v443
        %v644 = vpack.c.b16 %v469, %v444
        %v645 = vpack.c.b16 %v470, %v445
        %v646 = vpack.c.b16 %v471, %v446
        %v647 = vpack.c.b16 %v472, %v447
        %v648 = vpack.c.b16 %v473, %v448
        %v649 = vpack.c.b16 %v474, %v449
        %v650 = vpack.c.b16 %v475, %v450
        %v651 = vpack.c.b16 %v476, %v451
        %v652 = vpack.c.b16 %v477, %v452
        %v653 = vpack.c.b16 %v478, %v453
        %v654 = vpack.c.b16 %v479, %v454
        %v655 = vpack.c.b16 %v480, %v455
        %v656 = vpack.c.b16 %v481, %v456
        %v657 = vpack.c.b16 %v482, %v457
        %v658 = vpack.c.b16 %v483, %v458
        %v659 = vpack.c.b16 %v484, %v459
        %v660 = vpack.c.b16 %v485, %v460
        %v661 = vpack.c.b16 %v486, %v461
        %v662 = vpack.c.b16 %v487, %v462
        %v663 = vpack.c.b16 %v488, %v463
        %v664 = vpack.c.b16 %v489, %v464
        %v665 = vpack.c.b16 %v515, %v490
        %v666 = vpack.c.b16 %v516, %v491
        %v667 = vpack.c.b16 %v517, %v492
        %v668 = vpack.c.b16 %v518, %v493
        %v669 = vpack.c.b16 %v519, %v494
        %v670 = vpack.c.b16 %v520, %v495
        %v671 = vpack.c.b16 %v521, %v496
        %v672 = vpack.c.b16 %v522, %v497
        %v673 = vpack.c.b16 %v523, %v498
        %v674 = vpack.c.b16 %v524, %v499
        %v675 = vpack.c.b16 %v525, %v500
        %v676 = vpack.c.b16 %v526, %v501
        %v677 = vpack.c.b16 %v527, %v502
        %v678 = vpack.c.b16 %v528, %v503
        %v679 = vpack.c.b16 %v529, %v504
        %v680 = vpack.c.b16 %v530, %v505
        %v681 = vpack.c.b16 %v531, %v506
        %v682 = vpack.c.b16 %v532, %v507
        %v683 = vpack.c.b16 %v533, %v508
        %v684 = vpack.c.b16 %v534, %v509
        %v685 = vpack.c.b16 %v535, %v510
        %v686 = vpack.c.b16 %v536, %v511
        %v687 = vpack.c.b16 %v537, %v512
        %v688 = vpack.c.b16 %v538, %v513
        %v689 = vpack.c.b16 %v539, %v514
        %v690 = vpack.c.b16 %v565, %v540
        %v691 = vpack.c.b16 %v566, %v541
        %v692 = vpack.c.b16 %v567, %v542
        %v693 = vpack.c.b16 %v568, %v543
        %v694 = vpack.c.b16 %v569, %v544
        %v695 = vpack.c.b16 %v570, %v545
        %v696 = vpack.c.b16 %v571, %v546
        %v697 = vpack.c.b16 %v572, %v547
        %v698 = vpack.c.b16 %v573, %v548
        %v699 = vpack.c.b16 %v574, %v549
        %v700 = vpack.c.b16 %v575, %v550
        %v701 = vpack.c.b16 %v576, %v551
        %v702 = vpack.c.b16 %v577, %v552
        %v703 = vpack.c.b16 %v578, %v553
        %v704 = vpack.c.b16 %v579, %v554
        %v705 = vpack.c.b16 %v580, %v555
        %v706 = vpack.c.b16 %v581, %v556
        %v707 = vpack.c.b16 %v582, %v557
        %v708 = vpack.c.b16 %v583, %v558
        %v709 = vpack.c.b16 %v584, %v559
        %v710 = vpack.c.b16 %v585, %v560
        %v711 = vpack.c.b16 %v586, %v561
        %v712 = vpack.c.b16 %v587, %v562
        %v713 = vpack.c.b16 %v588, %v563
        %v714 = vpack.c.b16 %v589, %v564
        %v715 = vpack.c.b16 %v615, %v590
        %v716 = vpack.c.b16 %v616, %v591
        %v717 = vpack.c.b16 %v617, %v592
        %v718 = vpack.c.b16 %v618, %v593
        %v719 = vpack.c.b16 %v619, %v594
        %v720 = vpack.c.b16 %v620, %v595
        %v721 = vpack.c.b16 %v621, %v596
        %v722 = vpack.c.b16 %v622, %v597
        %v723 = vpack.c.b16 %v623, %v598
        %v724 = vpack.c.b16 %v624, %v599
        %v725 = vpack.c.b16 %v625, %v600
        %v726 = vpack.c.b16 %v626, %v601
        %v727 = vpack.c.b16 %v627, %v602
        %v728 = vpack.c.b16 %v628, %v603
        %v729 = vpack.c.b16 %v629, %v604
        %v730 = vpack.c.b16 %v630, %v605
        %v731 = vpack.c.b16 %v631, %v606
        %v732 = vpack.c.b16 %v632, %v607
        %v733 = vpack.c.b16 %v633, %v608
        %v734 = vpack.c.b16 %v634, %v609
        %v735 = vpack.c.b16 %v635, %v610
        %v736 = vpack.c.b16 %v636, %v611
        %v737 = vpack.c.b16 %v637, %v612
        %v738 = vpack.c.b16 %v638, %v613
        %v739 = vpack.c.b16 %v639, %v614
        %vm840 = vcmask 523264
        %v842 = vsel %vm840, %v226, 0
        %844 = vmatprep.subr.bf16.mxu0 %v641
        %845 = vmatpush1.bf16.msra.mxu0 %v640
        %846 = vmatprep.subr.bf16.mxu0 %v666
        %847 = vmatpush1.bf16.msra.mxu0 %v665
        %848 = vmatprep.subr.bf16.mxu0 %v691
        %849 = vmatpush1.bf16.msra.mxu0 %v690
        %850 = vmatprep.subr.bf16.mxu0 %v716
        %851 = vmatpush1.bf16.msra.mxu0 %v715
        %852 = vmatprep.subr.bf16.mxu0 0
        %853 = vmatpush1.bf16.msra.mxu0 0
        %854 = vmatprep.subr.bf16.mxu0 0
        %855 = vmatpush1.bf16.msra.mxu0 0
        %856 = vmatprep.subr.bf16.mxu0 0
        %857 = vmatpush1.bf16.msra.mxu0 0
        %858 = vmatprep.subr.bf16.mxu0 0
        %859 = vmatpush1.bf16.msra.mxu0 0
        %860 = vmatprep.subr.bf16.mxu0 0
        %861 = vmatpush1.bf16.msra.mxu0 0
        %862 = vmatprep.subr.bf16.mxu0 0
        %863 = vmatpush1.bf16.msra.mxu0 0
        %864 = vmatprep.subr.bf16.mxu0 0
        %865 = vmatpush1.bf16.msra.mxu0 0
        %866 = vmatprep.subr.bf16.mxu0 0
        %867 = vmatpush1.bf16.msra.mxu0 0
        %868 = vmatprep.subr.bf16.mxu0 0
        %869 = vmatpush1.bf16.msra.mxu0 0
        %870 = vmatprep.subr.bf16.mxu0 0
        %871 = vmatpush1.bf16.msra.mxu0 0
        %872 = vmatprep.subr.bf16.mxu0 0
        %873 = vmatpush1.bf16.msra.mxu0 0
        %874 = vmatprep.subr.bf16.mxu0 0
        %875 = vmatpush1.bf16.msra.mxu0 0
        %876 = vmatprep.mubr.bf16.mxu0 0
        %877 = vmatmul.mubr.bf16.gmra.mrb[0].mxu0 %v842
        %v878 = vpop.f32.mrb[0].mxu0
        %v879 = vadd.f32 0.0, %v878
        %v880 = vpop.f32.mrb[0].mxu0
        %v881 = vadd.f32 0.0, %v880
        %v882 = vpop.f32.mrb[0].mxu0
        %v883 = vadd.f32 0.0, %v882
        %v884 = vpop.f32.mrb[0].mxu0
        %v885 = vadd.f32 0.0, %v884
        %886 = vdwg.mxu0
        %887 = vmatprep.subr.bf16.mxu0 %v643
        %888 = vmatpush1.bf16.msra.mxu0 %v642
        %889 = vmatprep.subr.bf16.mxu0 %v668
        %890 = vmatpush1.bf16.msra.mxu0 %v667
        %891 = vmatprep.subr.bf16.mxu0 %v693
        %892 = vmatpush1.bf16.msra.mxu0 %v692
        %893 = vmatprep.subr.bf16.mxu0 %v718
        %894 = vmatpush1.bf16.msra.mxu0 %v717
        %895 = vmatprep.subr.bf16.mxu0 0
        %896 = vmatpush1.bf16.msra.mxu0 0
        %897 = vmatprep.subr.bf16.mxu0 0
        %898 = vmatpush1.bf16.msra.mxu0 0
        %899 = vmatprep.subr.bf16.mxu0 0
        %900 = vmatpush1.bf16.msra.mxu0 0
        %901 = vmatprep.subr.bf16.mxu0 0
        %902 = vmatpush1.bf16.msra.mxu0 0
        %903 = vmatprep.subr.bf16.mxu0 0
        %904 = vmatpush1.bf16.msra.mxu0 0
        %905 = vmatprep.subr.bf16.mxu0 0
        %906 = vmatpush1.bf16.msra.mxu0 0
        %907 = vmatprep.subr.bf16.mxu0 0
        %908 = vmatpush1.bf16.msra.mxu0 0
        %909 = vmatprep.subr.bf16.mxu0 0
        %910 = vmatpush1.bf16.msra.mxu0 0
        %911 = vmatprep.subr.bf16.mxu0 0
        %912 = vmatpush1.bf16.msra.mxu0 0
        %913 = vmatprep.subr.bf16.mxu0 0
        %914 = vmatpush1.bf16.msra.mxu0 0
        %915 = vmatprep.subr.bf16.mxu0 0
        %916 = vmatpush1.bf16.msra.mxu0 0
        %917 = vmatprep.subr.bf16.mxu0 0
        %918 = vmatpush1.bf16.msra.mxu0 0
        %919 = vmatprep.mubr.bf16.mxu0 0
        %920 = vmatmul.mubr.bf16.gmra.mrb[0].mxu0 %v842
        %v921 = vpop.f32.mrb[0].mxu0
        %v922 = vadd.f32 0.0, %v921
        %v923 = vpop.f32.mrb[0].mxu0
        %v924 = vadd.f32 0.0, %v923
        %v925 = vpop.f32.mrb[0].mxu0
        %v926 = vadd.f32 0.0, %v925
        %v927 = vpop.f32.mrb[0].mxu0
        %v928 = vadd.f32 0.0, %v927
        %929 = vdwg.mxu0
        %930 = vmatprep.subr.bf16.mxu0 %v645
        %931 = vmatpush1.bf16.msra.mxu0 %v644
        %932 = vmatprep.subr.bf16.mxu0 %v670
        %933 = vmatpush1.bf16.msra.mxu0 %v669
        %934 = vmatprep.subr.bf16.mxu0 %v695
        %935 = vmatpush1.bf16.msra.mxu0 %v694
        %936 = vmatprep.subr.bf16.mxu0 %v720
        %937 = vmatpush1.bf16.msra.mxu0 %v719
        %938 = vmatprep.subr.bf16.mxu0 0
        %939 = vmatpush1.bf16.msra.mxu0 0
        %940 = vmatprep.subr.bf16.mxu0 0
        %941 = vmatpush1.bf16.msra.mxu0 0
        %942 = vmatprep.subr.bf16.mxu0 0
        %943 = vmatpush1.bf16.msra.mxu0 0
        %944 = vmatprep.subr.bf16.mxu0 0
        %945 = vmatpush1.bf16.msra.mxu0 0
        %946 = vmatprep.subr.bf16.mxu0 0
        %947 = vmatpush1.bf16.msra.mxu0 0
        %948 = vmatprep.subr.bf16.mxu0 0
        %949 = vmatpush1.bf16.msra.mxu0 0
        %950 = vmatprep.subr.bf16.mxu0 0
        %951 = vmatpush1.bf16.msra.mxu0 0
        %952 = vmatprep.subr.bf16.mxu0 0
        %953 = vmatpush1.bf16.msra.mxu0 0
        %954 = vmatprep.subr.bf16.mxu0 0
        %955 = vmatpush1.bf16.msra.mxu0 0
        %956 = vmatprep.subr.bf16.mxu0 0
        %957 = vmatpush1.bf16.msra.mxu0 0
        %958 = vmatprep.subr.bf16.mxu0 0
        %959 = vmatpush1.bf16.msra.mxu0 0
        %960 = vmatprep.subr.bf16.mxu0 0
        %961 = vmatpush1.bf16.msra.mxu0 0
        %962 = vmatprep.mubr.bf16.mxu0 0
        %963 = vmatmul.mubr.bf16.gmra.mrb[0].mxu0 %v842
        %v964 = vpop.f32.mrb[0].mxu0
        %v965 = vadd.f32 0.0, %v964
        %v966 = vpop.f32.mrb[0].mxu0
        %v967 = vadd.f32 0.0, %v966
        %v968 = vpop.f32.mrb[0].mxu0
        %v969 = vadd.f32 0.0, %v968
        %v970 = vpop.f32.mrb[0].mxu0
        %v971 = vadd.f32 0.0, %v970
        %972 = vdwg.mxu0
        %973 = vmatprep.subr.bf16.mxu0 %v647
        %974 = vmatpush1.bf16.msra.mxu0 %v646
        %975 = vmatprep.subr.bf16.mxu0 %v672
        %976 = vmatpush1.bf16.msra.mxu0 %v671
        %977 = vmatprep.subr.bf16.mxu0 %v697
        %978 = vmatpush1.bf16.msra.mxu0 %v696
        %979 = vmatprep.subr.bf16.mxu0 %v722
        %980 = vmatpush1.bf16.msra.mxu0 %v721
        %981 = vmatprep.subr.bf16.mxu0 0
        %982 = vmatpush1.bf16.msra.mxu0 0
        %983 = vmatprep.subr.bf16.mxu0 0
        %984 = vmatpush1.bf16.msra.mxu0 0
        %985 = vmatprep.subr.bf16.mxu0 0
        %986 = vmatpush1.bf16.msra.mxu0 0
        %987 = vmatprep.subr.bf16.mxu0 0
        %988 = vmatpush1.bf16.msra.mxu0 0
        %989 = vmatprep.subr.bf16.mxu0 0
        %990 = vmatpush1.bf16.msra.mxu0 0
        %991 = vmatprep.subr.bf16.mxu0 0
        %992 = vmatpush1.bf16.msra.mxu0 0
        %993 = vmatprep.subr.bf16.mxu0 0
        %994 = vmatpush1.bf16.msra.mxu0 0
        %995 = vmatprep.subr.bf16.mxu0 0
        %996 = vmatpush1.bf16.msra.mxu0 0
        %997 = vmatprep.subr.bf16.mxu0 0
        %998 = vmatpush1.bf16.msra.mxu0 0
        %999 = vmatprep.subr.bf16.mxu0 0
        %1000 = vmatpush1.bf16.msra.mxu0 0
        %1001 = vmatprep.subr.bf16.mxu0 0
        %1002 = vmatpush1.bf16.msra.mxu0 0
        %1003 = vmatprep.subr.bf16.mxu0 0
        %1004 = vmatpush1.bf16.msra.mxu0 0
        %1005 = vmatprep.mubr.bf16.mxu0 0
        %1006 = vmatmul.mubr.bf16.gmra.mrb[0].mxu0 %v842
        %v1007 = vpop.f32.mrb[0].mxu0
        %v1008 = vadd.f32 0.0, %v1007
        %v1009 = vpop.f32.mrb[0].mxu0
        %v1010 = vadd.f32 0.0, %v1009
        %v1011 = vpop.f32.mrb[0].mxu0
        %v1012 = vadd.f32 0.0, %v1011
        %v1013 = vpop.f32.mrb[0].mxu0
        %v1014 = vadd.f32 0.0, %v1013
        %1015 = vdwg.mxu0
        %1016 = vmatprep.subr.bf16.mxu0 %v649
        %1017 = vmatpush1.bf16.msra.mxu0 %v648
        %1018 = vmatprep.subr.bf16.mxu0 %v674
        %1019 = vmatpush1.bf16.msra.mxu0 %v673
        %1020 = vmatprep.subr.bf16.mxu0 %v699
        %1021 = vmatpush1.bf16.msra.mxu0 %v698
        %1022 = vmatprep.subr.bf16.mxu0 %v724
        %1023 = vmatpush1.bf16.msra.mxu0 %v723
        %1024 = vmatprep.subr.bf16.mxu0 0
        %1025 = vmatpush1.bf16.msra.mxu0 0
        %1026 = vmatprep.subr.bf16.mxu0 0
        %1027 = vmatpush1.bf16.msra.mxu0 0
        %1028 = vmatprep.subr.bf16.mxu0 0
        %1029 = vmatpush1.bf16.msra.mxu0 0
        %1030 = vmatprep.subr.bf16.mxu0 0
        %1031 = vmatpush1.bf16.msra.mxu0 0
        %1032 = vmatprep.subr.bf16.mxu0 0
        %1033 = vmatpush1.bf16.msra.mxu0 0
        %1034 = vmatprep.subr.bf16.mxu0 0
        %1035 = vmatpush1.bf16.msra.mxu0 0
        %1036 = vmatprep.subr.bf16.mxu0 0
        %1037 = vmatpush1.bf16.msra.mxu0 0
        %1038 = vmatprep.subr.bf16.mxu0 0
        %1039 = vmatpush1.bf16.msra.mxu0 0
        %1040 = vmatprep.subr.bf16.mxu0 0
        %1041 = vmatpush1.bf16.msra.mxu0 0
        %1042 = vmatprep.subr.bf16.mxu0 0
        %1043 = vmatpush1.bf16.msra.mxu0 0
        %1044 = vmatprep.subr.bf16.mxu0 0
        %1045 = vmatpush1.bf16.msra.mxu0 0
        %1046 = vmatprep.subr.bf16.mxu0 0
        %1047 = vmatpush1.bf16.msra.mxu0 0
        %1048 = vmatprep.mubr.bf16.mxu0 0
        %1049 = vmatmul.mubr.bf16.gmra.mrb[0].mxu0 %v842
        %v1050 = vpop.f32.mrb[0].mxu0
        %v1051 = vadd.f32 0.0, %v1050
        %v1052 = vpop.f32.mrb[0].mxu0
        %v1053 = vadd.f32 0.0, %v1052
        %v1054 = vpop.f32.mrb[0].mxu0
        %v1055 = vadd.f32 0.0, %v1054
        %v1056 = vpop.f32.mrb[0].mxu0
        %v1057 = vadd.f32 0.0, %v1056
        %1058 = vdwg.mxu0
        %1059 = vmatprep.subr.bf16.mxu0 %v651
        %1060 = vmatpush1.bf16.msra.mxu0 %v650
        %1061 = vmatprep.subr.bf16.mxu0 %v676
        %1062 = vmatpush1.bf16.msra.mxu0 %v675
        %1063 = vmatprep.subr.bf16.mxu0 %v701
        %1064 = vmatpush1.bf16.msra.mxu0 %v700
        %1065 = vmatprep.subr.bf16.mxu0 %v726
        %1066 = vmatpush1.bf16.msra.mxu0 %v725
        %1067 = vmatprep.subr.bf16.mxu0 0
        %1068 = vmatpush1.bf16.msra.mxu0 0
        %1069 = vmatprep.subr.bf16.mxu0 0
        %1070 = vmatpush1.bf16.msra.mxu0 0
        %1071 = vmatprep.subr.bf16.mxu0 0
        %1072 = vmatpush1.bf16.msra.mxu0 0
        %1073 = vmatprep.subr.bf16.mxu0 0
        %1074 = vmatpush1.bf16.msra.mxu0 0
        %1075 = vmatprep.subr.bf16.mxu0 0
        %1076 = vmatpush1.bf16.msra.mxu0 0
        %1077 = vmatprep.subr.bf16.mxu0 0
        %1078 = vmatpush1.bf16.msra.mxu0 0
        %1079 = vmatprep.subr.bf16.mxu0 0
        %1080 = vmatpush1.bf16.msra.mxu0 0
        %1081 = vmatprep.subr.bf16.mxu0 0
        %1082 = vmatpush1.bf16.msra.mxu0 0
        %1083 = vmatprep.subr.bf16.mxu0 0
        %1084 = vmatpush1.bf16.msra.mxu0 0
        %1085 = vmatprep.subr.bf16.mxu0 0
        %1086 = vmatpush1.bf16.msra.mxu0 0
        %1087 = vmatprep.subr.bf16.mxu0 0
        %1088 = vmatpush1.bf16.msra.mxu0 0
        %1089 = vmatprep.subr.bf16.mxu0 0
        %1090 = vmatpush1.bf16.msra.mxu0 0
        %1091 = vmatprep.mubr.bf16.mxu0 0
        %1092 = vmatmul.mubr.bf16.gmra.mrb[0].mxu0 %v842
        %v1093 = vpop.f32.mrb[0].mxu0
        %v1094 = vadd.f32 0.0, %v1093
        %v1095 = vpop.f32.mrb[0].mxu0
        %v1096 = vadd.f32 0.0, %v1095
        %v1097 = vpop.f32.mrb[0].mxu0
        %v1098 = vadd.f32 0.0, %v1097
        %v1099 = vpop.f32.mrb[0].mxu0
        %v1100 = vadd.f32 0.0, %v1099
        %1101 = vdwg.mxu0
        %1102 = vmatprep.subr.bf16.mxu0 %v653
        %1103 = vmatpush1.bf16.msra.mxu0 %v652
        %1104 = vmatprep.subr.bf16.mxu0 %v678
        %1105 = vmatpush1.bf16.msra.mxu0 %v677
        %1106 = vmatprep.subr.bf16.mxu0 %v703
        %1107 = vmatpush1.bf16.msra.mxu0 %v702
        %1108 = vmatprep.subr.bf16.mxu0 %v728
        %1109 = vmatpush1.bf16.msra.mxu0 %v727
        %1110 = vmatprep.subr.bf16.mxu0 0
        %1111 = vmatpush1.bf16.msra.mxu0 0
        %1112 = vmatprep.subr.bf16.mxu0 0
        %1113 = vmatpush1.bf16.msra.mxu0 0
        %1114 = vmatprep.subr.bf16.mxu0 0
        %1115 = vmatpush1.bf16.msra.mxu0 0
        %1116 = vmatprep.subr.bf16.mxu0 0
        %1117 = vmatpush1.bf16.msra.mxu0 0
        %1118 = vmatprep.subr.bf16.mxu0 0
        %1119 = vmatpush1.bf16.msra.mxu0 0
        %1120 = vmatprep.subr.bf16.mxu0 0
        %1121 = vmatpush1.bf16.msra.mxu0 0
        %1122 = vmatprep.subr.bf16.mxu0 0
        %1123 = vmatpush1.bf16.msra.mxu0 0
        %1124 = vmatprep.subr.bf16.mxu0 0
        %1125 = vmatpush1.bf16.msra.mxu0 0
        %1126 = vmatprep.subr.bf16.mxu0 0
        %1127 = vmatpush1.bf16.msra.mxu0 0
        %1128 = vmatprep.subr.bf16.mxu0 0
        %1129 = vmatpush1.bf16.msra.mxu0 0
        %1130 = vmatprep.subr.bf16.mxu0 0
        %1131 = vmatpush1.bf16.msra.mxu0 0
        %1132 = vmatprep.subr.bf16.mxu0 0
        %1133 = vmatpush1.bf16.msra.mxu0 0
        %1134 = vmatprep.mubr.bf16.mxu0 0
        %1135 = vmatmul.mubr.bf16.gmra.mrb[0].mxu0 %v842
        %v1136 = vpop.f32.mrb[0].mxu0
        %v1137 = vadd.f32 0.0, %v1136
        %v1138 = vpop.f32.mrb[0].mxu0
        %v1139 = vadd.f32 0.0, %v1138
        %v1140 = vpop.f32.mrb[0].mxu0
        %v1141 = vadd.f32 0.0, %v1140
        %v1142 = vpop.f32.mrb[0].mxu0
        %v1143 = vadd.f32 0.0, %v1142
        %1144 = vdwg.mxu0
        %1145 = vmatprep.subr.bf16.mxu0 %v655
        %1146 = vmatpush1.bf16.msra.mxu0 %v654
        %1147 = vmatprep.subr.bf16.mxu0 %v680
        %1148 = vmatpush1.bf16.msra.mxu0 %v679
        %1149 = vmatprep.subr.bf16.mxu0 %v705
        %1150 = vmatpush1.bf16.msra.mxu0 %v704
        %1151 = vmatprep.subr.bf16.mxu0 %v730
        %1152 = vmatpush1.bf16.msra.mxu0 %v729
        %1153 = vmatprep.subr.bf16.mxu0 0
        %1154 = vmatpush1.bf16.msra.mxu0 0
        %1155 = vmatprep.subr.bf16.mxu0 0
        %1156 = vmatpush1.bf16.msra.mxu0 0
        %1157 = vmatprep.subr.bf16.mxu0 0
        %1158 = vmatpush1.bf16.msra.mxu0 0
        %1159 = vmatprep.subr.bf16.mxu0 0
        %1160 = vmatpush1.bf16.msra.mxu0 0
        %1161 = vmatprep.subr.bf16.mxu0 0
        %1162 = vmatpush1.bf16.msra.mxu0 0
        %1163 = vmatprep.subr.bf16.mxu0 0
        %1164 = vmatpush1.bf16.msra.mxu0 0
        %1165 = vmatprep.subr.bf16.mxu0 0
        %1166 = vmatpush1.bf16.msra.mxu0 0
        %1167 = vmatprep.subr.bf16.mxu0 0
        %1168 = vmatpush1.bf16.msra.mxu0 0
        %1169 = vmatprep.subr.bf16.mxu0 0
        %1170 = vmatpush1.bf16.msra.mxu0 0
        %1171 = vmatprep.subr.bf16.mxu0 0
        %1172 = vmatpush1.bf16.msra.mxu0 0
        %1173 = vmatprep.subr.bf16.mxu0 0
        %1174 = vmatpush1.bf16.msra.mxu0 0
        %1175 = vmatprep.subr.bf16.mxu0 0
        %1176 = vmatpush1.bf16.msra.mxu0 0
        %1177 = vmatprep.mubr.bf16.mxu0 0
        %1178 = vmatmul.mubr.bf16.gmra.mrb[0].mxu0 %v842
        %v1179 = vpop.f32.mrb[0].mxu0
        %v1180 = vadd.f32 0.0, %v1179
        %v1181 = vpop.f32.mrb[0].mxu0
        %v1182 = vadd.f32 0.0, %v1181
        %v1183 = vpop.f32.mrb[0].mxu0
        %v1184 = vadd.f32 0.0, %v1183
        %v1185 = vpop.f32.mrb[0].mxu0
        %v1186 = vadd.f32 0.0, %v1185
        %1187 = vdwg.mxu0
        %1188 = vmatprep.subr.bf16.mxu0 %v657
        %1189 = vmatpush1.bf16.msra.mxu0 %v656
        %1190 = vmatprep.subr.bf16.mxu0 %v682
        %1191 = vmatpush1.bf16.msra.mxu0 %v681
        %1192 = vmatprep.subr.bf16.mxu0 %v707
        %1193 = vmatpush1.bf16.msra.mxu0 %v706
        %1194 = vmatprep.subr.bf16.mxu0 %v732
        %1195 = vmatpush1.bf16.msra.mxu0 %v731
        %1196 = vmatprep.subr.bf16.mxu0 0
        %1197 = vmatpush1.bf16.msra.mxu0 0
        %1198 = vmatprep.subr.bf16.mxu0 0
        %1199 = vmatpush1.bf16.msra.mxu0 0
        %1200 = vmatprep.subr.bf16.mxu0 0
        %1201 = vmatpush1.bf16.msra.mxu0 0
        %1202 = vmatprep.subr.bf16.mxu0 0
        %1203 = vmatpush1.bf16.msra.mxu0 0
        %1204 = vmatprep.subr.bf16.mxu0 0
        %1205 = vmatpush1.bf16.msra.mxu0 0
        %1206 = vmatprep.subr.bf16.mxu0 0
        %1207 = vmatpush1.bf16.msra.mxu0 0
        %1208 = vmatprep.subr.bf16.mxu0 0
        %1209 = vmatpush1.bf16.msra.mxu0 0
        %1210 = vmatprep.subr.bf16.mxu0 0
        %1211 = vmatpush1.bf16.msra.mxu0 0
        %1212 = vmatprep.subr.bf16.mxu0 0
        %1213 = vmatpush1.bf16.msra.mxu0 0
        %1214 = vmatprep.subr.bf16.mxu0 0
        %1215 = vmatpush1.bf16.msra.mxu0 0
        %1216 = vmatprep.subr.bf16.mxu0 0
        %1217 = vmatpush1.bf16.msra.mxu0 0
        %1218 = vmatprep.subr.bf16.mxu0 0
        %1219 = vmatpush1.bf16.msra.mxu0 0
        %1220 = vmatprep.mubr.bf16.mxu0 0
        %1221 = vmatmul.mubr.bf16.gmra.mrb[0].mxu0 %v842
        %v1222 = vpop.f32.mrb[0].mxu0
        %v1223 = vadd.f32 0.0, %v1222
        %v1224 = vpop.f32.mrb[0].mxu0
        %v1225 = vadd.f32 0.0, %v1224
        %v1226 = vpop.f32.mrb[0].mxu0
        %v1227 = vadd.f32 0.0, %v1226
        %v1228 = vpop.f32.mrb[0].mxu0
        %v1229 = vadd.f32 0.0, %v1228
        %1230 = vdwg.mxu0
        %1231 = vmatprep.subr.bf16.mxu0 %v659
        %1232 = vmatpush1.bf16.msra.mxu0 %v658
        %1233 = vmatprep.subr.bf16.mxu0 %v684
        %1234 = vmatpush1.bf16.msra.mxu0 %v683
        %1235 = vmatprep.subr.bf16.mxu0 %v709
        %1236 = vmatpush1.bf16.msra.mxu0 %v708
        %1237 = vmatprep.subr.bf16.mxu0 %v734
        %1238 = vmatpush1.bf16.msra.mxu0 %v733
        %1239 = vmatprep.subr.bf16.mxu0 0
        %1240 = vmatpush1.bf16.msra.mxu0 0
        %1241 = vmatprep.subr.bf16.mxu0 0
        %1242 = vmatpush1.bf16.msra.mxu0 0
        %1243 = vmatprep.subr.bf16.mxu0 0
        %1244 = vmatpush1.bf16.msra.mxu0 0
        %1245 = vmatprep.subr.bf16.mxu0 0
        %1246 = vmatpush1.bf16.msra.mxu0 0
        %1247 = vmatprep.subr.bf16.mxu0 0
        %1248 = vmatpush1.bf16.msra.mxu0 0
        %1249 = vmatprep.subr.bf16.mxu0 0
        %1250 = vmatpush1.bf16.msra.mxu0 0
        %1251 = vmatprep.subr.bf16.mxu0 0
        %1252 = vmatpush1.bf16.msra.mxu0 0
        %1253 = vmatprep.subr.bf16.mxu0 0
        %1254 = vmatpush1.bf16.msra.mxu0 0
        %1255 = vmatprep.subr.bf16.mxu0 0
        %1256 = vmatpush1.bf16.msra.mxu0 0
        %1257 = vmatprep.subr.bf16.mxu0 0
        %1258 = vmatpush1.bf16.msra.mxu0 0
        %1259 = vmatprep.subr.bf16.mxu0 0
        %1260 = vmatpush1.bf16.msra.mxu0 0
        %1261 = vmatprep.subr.bf16.mxu0 0
        %1262 = vmatpush1.bf16.msra.mxu0 0
        %1263 = vmatprep.mubr.bf16.mxu0 0
        %1264 = vmatmul.mubr.bf16.gmra.mrb[0].mxu0 %v842
        %v1265 = vpop.f32.mrb[0].mxu0
        %v1266 = vadd.f32 0.0, %v1265
        %v1267 = vpop.f32.mrb[0].mxu0
        %v1268 = vadd.f32 0.0, %v1267
        %v1269 = vpop.f32.mrb[0].mxu0
        %v1270 = vadd.f32 0.0, %v1269
        %v1271 = vpop.f32.mrb[0].mxu0
        %v1272 = vadd.f32 0.0, %v1271
        %1273 = vdwg.mxu0
        %1274 = vmatprep.subr.bf16.mxu0 %v661
        %1275 = vmatpush1.bf16.msra.mxu0 %v660
        %1276 = vmatprep.subr.bf16.mxu0 %v686
        %1277 = vmatpush1.bf16.msra.mxu0 %v685
        %1278 = vmatprep.subr.bf16.mxu0 %v711
        %1279 = vmatpush1.bf16.msra.mxu0 %v710
        %1280 = vmatprep.subr.bf16.mxu0 %v736
        %1281 = vmatpush1.bf16.msra.mxu0 %v735
        %1282 = vmatprep.subr.bf16.mxu0 0
        %1283 = vmatpush1.bf16.msra.mxu0 0
        %1284 = vmatprep.subr.bf16.mxu0 0
        %1285 = vmatpush1.bf16.msra.mxu0 0
        %1286 = vmatprep.subr.bf16.mxu0 0
        %1287 = vmatpush1.bf16.msra.mxu0 0
        %1288 = vmatprep.subr.bf16.mxu0 0
        %1289 = vmatpush1.bf16.msra.mxu0 0
        %1290 = vmatprep.subr.bf16.mxu0 0
        %1291 = vmatpush1.bf16.msra.mxu0 0
        %1292 = vmatprep.subr.bf16.mxu0 0
        %1293 = vmatpush1.bf16.msra.mxu0 0
        %1294 = vmatprep.subr.bf16.mxu0 0
        %1295 = vmatpush1.bf16.msra.mxu0 0
        %1296 = vmatprep.subr.bf16.mxu0 0
        %1297 = vmatpush1.bf16.msra.mxu0 0
        %1298 = vmatprep.subr.bf16.mxu0 0
        %1299 = vmatpush1.bf16.msra.mxu0 0
        %1300 = vmatprep.subr.bf16.mxu0 0
        %1301 = vmatpush1.bf16.msra.mxu0 0
        %1302 = vmatprep.subr.bf16.mxu0 0
        %1303 = vmatpush1.bf16.msra.mxu0 0
        %1304 = vmatprep.subr.bf16.mxu0 0
        %1305 = vmatpush1.bf16.msra.mxu0 0
        %1306 = vmatprep.mubr.bf16.mxu0 0
        %1307 = vmatmul.mubr.bf16.gmra.mrb[0].mxu0 %v842
        %v1308 = vpop.f32.mrb[0].mxu0
        %v1309 = vadd.f32 0.0, %v1308
        %v1310 = vpop.f32.mrb[0].mxu0
        %v1311 = vadd.f32 0.0, %v1310
        %v1312 = vpop.f32.mrb[0].mxu0
        %v1313 = vadd.f32 0.0, %v1312
        %v1314 = vpop.f32.mrb[0].mxu0
        %v1315 = vadd.f32 0.0, %v1314
        %1316 = vdwg.mxu0
        %1317 = vmatprep.subr.bf16.mxu0 %v663
        %1318 = vmatpush1.bf16.msra.mxu0 %v662
        %1319 = vmatprep.subr.bf16.mxu0 %v688
        %1320 = vmatpush1.bf16.msra.mxu0 %v687
        %1321 = vmatprep.subr.bf16.mxu0 %v713
        %1322 = vmatpush1.bf16.msra.mxu0 %v712
        %1323 = vmatprep.subr.bf16.mxu0 %v738
        %1324 = vmatpush1.bf16.msra.mxu0 %v737
        %1325 = vmatprep.subr.bf16.mxu0 0
        %1326 = vmatpush1.bf16.msra.mxu0 0
        %1327 = vmatprep.subr.bf16.mxu0 0
        %1328 = vmatpush1.bf16.msra.mxu0 0
        %1329 = vmatprep.subr.bf16.mxu0 0
        %1330 = vmatpush1.bf16.msra.mxu0 0
        %1331 = vmatprep.subr.bf16.mxu0 0
        %1332 = vmatpush1.bf16.msra.mxu0 0
        %1333 = vmatprep.subr.bf16.mxu0 0
        %1334 = vmatpush1.bf16.msra.mxu0 0
        %1335 = vmatprep.subr.bf16.mxu0 0
        %1336 = vmatpush1.bf16.msra.mxu0 0
        %1337 = vmatprep.subr.bf16.mxu0 0
        %1338 = vmatpush1.bf16.msra.mxu0 0
        %1339 = vmatprep.subr.bf16.mxu0 0
        %1340 = vmatpush1.bf16.msra.mxu0 0
        %1341 = vmatprep.subr.bf16.mxu0 0
        %1342 = vmatpush1.bf16.msra.mxu0 0
        %1343 = vmatprep.subr.bf16.mxu0 0
        %1344 = vmatpush1.bf16.msra.mxu0 0
        %1345 = vmatprep.subr.bf16.mxu0 0
        %1346 = vmatpush1.bf16.msra.mxu0 0
        %1347 = vmatprep.subr.bf16.mxu0 0
        %1348 = vmatpush1.bf16.msra.mxu0 0
        %1349 = vmatprep.mubr.bf16.mxu0 0
        %1350 = vmatmul.mubr.bf16.gmra.mrb[0].mxu0 %v842
        %v1351 = vpop.f32.mrb[0].mxu0
        %v1352 = vadd.f32 0.0, %v1351
        %v1353 = vpop.f32.mrb[0].mxu0
        %v1354 = vadd.f32 0.0, %v1353
        %v1355 = vpop.f32.mrb[0].mxu0
        %v1356 = vadd.f32 0.0, %v1355
        %v1357 = vpop.f32.mrb[0].mxu0
        %v1358 = vadd.f32 0.0, %v1357
        %1359 = vdwg.mxu0
        %1360 = vmatprep.subr.bf16.mxu0 0
        %1361 = vmatpush1.bf16.msra.mxu0 %v664
        %1362 = vmatprep.subr.bf16.mxu0 0
        %1363 = vmatpush1.bf16.msra.mxu0 %v689
        %1364 = vmatprep.subr.bf16.mxu0 0
        %1365 = vmatpush1.bf16.msra.mxu0 %v714
        %1366 = vmatprep.subr.bf16.mxu0 0
        %1367 = vmatpush1.bf16.msra.mxu0 %v739
        %1368 = vmatprep.subr.bf16.mxu0 0
        %1369 = vmatpush1.bf16.msra.mxu0 0
        %1370 = vmatprep.subr.bf16.mxu0 0
        %1371 = vmatpush1.bf16.msra.mxu0 0
        %1372 = vmatprep.subr.bf16.mxu0 0
        %1373 = vmatpush1.bf16.msra.mxu0 0
        %1374 = vmatprep.subr.bf16.mxu0 0
        %1375 = vmatpush1.bf16.msra.mxu0 0
        %1376 = vmatprep.subr.bf16.mxu0 0
        %1377 = vmatpush1.bf16.msra.mxu0 0
        %1378 = vmatprep.subr.bf16.mxu0 0
        %1379 = vmatpush1.bf16.msra.mxu0 0
        %1380 = vmatprep.subr.bf16.mxu0 0
        %1381 = vmatpush1.bf16.msra.mxu0 0
        %1382 = vmatprep.subr.bf16.mxu0 0
        %1383 = vmatpush1.bf16.msra.mxu0 0
        %1384 = vmatprep.subr.bf16.mxu0 0
        %1385 = vmatpush1.bf16.msra.mxu0 0
        %1386 = vmatprep.subr.bf16.mxu0 0
        %1387 = vmatpush1.bf16.msra.mxu0 0
        %1388 = vmatprep.subr.bf16.mxu0 0
        %1389 = vmatpush1.bf16.msra.mxu0 0
        %1390 = vmatprep.subr.bf16.mxu0 0
        %1391 = vmatpush1.bf16.msra.mxu0 0
        %1392 = vmatprep.mubr.bf16.mxu0 0
        %1393 = vmatmul.mubr.bf16.gmra.mrb[0].mxu0 %v842
        %v1394 = vpop.f32.mrb[0].mxu0
        %v1395 = vadd.f32 0.0, %v1394
        %v1396 = vpop.f32.mrb[0].mxu0
        %v1397 = vpop.f32.mrb[0].mxu0
        %v1398 = vadd.f32 0.0, %v1397
        %v1399 = vpop.f32.mrb[0].mxu0
        %1400 = vdwg.mxu0
        %v1402 = vsel %vm840, %v221, 0
        %1404 = vmatprep.subr.bf16.mxu0 %v641
        %1405 = vmatpush1.bf16.msra.mxu0 %v640
        %1406 = vmatprep.subr.bf16.mxu0 %v666
        %1407 = vmatpush1.bf16.msra.mxu0 %v665
        %1408 = vmatprep.subr.bf16.mxu0 %v691
        %1409 = vmatpush1.bf16.msra.mxu0 %v690
        %1410 = vmatprep.subr.bf16.mxu0 %v716
        %1411 = vmatpush1.bf16.msra.mxu0 %v715
        %1412 = vmatprep.subr.bf16.mxu0 0
        %1413 = vmatpush1.bf16.msra.mxu0 0
        %1414 = vmatprep.subr.bf16.mxu0 0
        %1415 = vmatpush1.bf16.msra.mxu0 0
        %1416 = vmatprep.subr.bf16.mxu0 0
        %1417 = vmatpush1.bf16.msra.mxu0 0
        %1418 = vmatprep.subr.bf16.mxu0 0
        %1419 = vmatpush1.bf16.msra.mxu0 0
        %1420 = vmatprep.subr.bf16.mxu0 0
        %1421 = vmatpush1.bf16.msra.mxu0 0
        %1422 = vmatprep.subr.bf16.mxu0 0
        %1423 = vmatpush1.bf16.msra.mxu0 0
        %1424 = vmatprep.subr.bf16.mxu0 0
        %1425 = vmatpush1.bf16.msra.mxu0 0
        %1426 = vmatprep.subr.bf16.mxu0 0
        %1427 = vmatpush1.bf16.msra.mxu0 0
        %1428 = vmatprep.subr.bf16.mxu0 0
        %1429 = vmatpush1.bf16.msra.mxu0 0
        %1430 = vmatprep.subr.bf16.mxu0 0
        %1431 = vmatpush1.bf16.msra.mxu0 0
        %1432 = vmatprep.subr.bf16.mxu0 0
        %1433 = vmatpush1.bf16.msra.mxu0 0
        %1434 = vmatprep.subr.bf16.mxu0 0
        %1435 = vmatpush1.bf16.msra.mxu0 0
        %1436 = vmatprep.mubr.bf16.mxu0 0
        %1437 = vmatmul.mubr.bf16.gmra.mrb[0].mxu0 %v1402
        %v1438 = vpop.f32.mrb[0].mxu0
        %v1439 = vadd.f32 %v879, %v1438
        %v1440 = vpop.f32.mrb[0].mxu0
        %v1441 = vadd.f32 %v881, %v1440
        %v1442 = vpop.f32.mrb[0].mxu0
        %v1443 = vadd.f32 %v883, %v1442
        %v1444 = vpop.f32.mrb[0].mxu0
        %v1445 = vadd.f32 %v885, %v1444
        %1446 = vdwg.mxu0
        %1447 = vmatprep.subr.bf16.mxu0 %v643
        %1448 = vmatpush1.bf16.msra.mxu0 %v642
        %1449 = vmatprep.subr.bf16.mxu0 %v668
        %1450 = vmatpush1.bf16.msra.mxu0 %v667
        %1451 = vmatprep.subr.bf16.mxu0 %v693
        %1452 = vmatpush1.bf16.msra.mxu0 %v692
        %1453 = vmatprep.subr.bf16.mxu0 %v718
        %1454 = vmatpush1.bf16.msra.mxu0 %v717
        %1455 = vmatprep.subr.bf16.mxu0 0
        %1456 = vmatpush1.bf16.msra.mxu0 0
        %1457 = vmatprep.subr.bf16.mxu0 0
        %1458 = vmatpush1.bf16.msra.mxu0 0
        %1459 = vmatprep.subr.bf16.mxu0 0
        %1460 = vmatpush1.bf16.msra.mxu0 0
        %1461 = vmatprep.subr.bf16.mxu0 0
        %1462 = vmatpush1.bf16.msra.mxu0 0
        %1463 = vmatprep.subr.bf16.mxu0 0
        %1464 = vmatpush1.bf16.msra.mxu0 0
        %1465 = vmatprep.subr.bf16.mxu0 0
        %1466 = vmatpush1.bf16.msra.mxu0 0
        %1467 = vmatprep.subr.bf16.mxu0 0
        %1468 = vmatpush1.bf16.msra.mxu0 0
        %1469 = vmatprep.subr.bf16.mxu0 0
        %1470 = vmatpush1.bf16.msra.mxu0 0
        %1471 = vmatprep.subr.bf16.mxu0 0
        %1472 = vmatpush1.bf16.msra.mxu0 0
        %1473 = vmatprep.subr.bf16.mxu0 0
        %1474 = vmatpush1.bf16.msra.mxu0 0
        %1475 = vmatprep.subr.bf16.mxu0 0
        %1476 = vmatpush1.bf16.msra.mxu0 0
        %1477 = vmatprep.subr.bf16.mxu0 0
        %1478 = vmatpush1.bf16.msra.mxu0 0
        %1479 = vmatprep.mubr.bf16.mxu0 0
        %1480 = vmatmul.mubr.bf16.gmra.mrb[0].mxu0 %v1402
        %v1481 = vpop.f32.mrb[0].mxu0
        %v1482 = vadd.f32 %v922, %v1481
        %v1483 = vpop.f32.mrb[0].mxu0
        %v1484 = vadd.f32 %v924, %v1483
        %v1485 = vpop.f32.mrb[0].mxu0
        %v1486 = vadd.f32 %v926, %v1485
        %v1487 = vpop.f32.mrb[0].mxu0
        %v1488 = vadd.f32 %v928, %v1487
        %1489 = vdwg.mxu0
        %1490 = vmatprep.subr.bf16.mxu0 %v645
        %1491 = vmatpush1.bf16.msra.mxu0 %v644
        %1492 = vmatprep.subr.bf16.mxu0 %v670
        %1493 = vmatpush1.bf16.msra.mxu0 %v669
        %1494 = vmatprep.subr.bf16.mxu0 %v695
        %1495 = vmatpush1.bf16.msra.mxu0 %v694
        %1496 = vmatprep.subr.bf16.mxu0 %v720
        %1497 = vmatpush1.bf16.msra.mxu0 %v719
        %1498 = vmatprep.subr.bf16.mxu0 0
        %1499 = vmatpush1.bf16.msra.mxu0 0
        %1500 = vmatprep.subr.bf16.mxu0 0
        %1501 = vmatpush1.bf16.msra.mxu0 0
        %1502 = vmatprep.subr.bf16.mxu0 0
        %1503 = vmatpush1.bf16.msra.mxu0 0
        %1504 = vmatprep.subr.bf16.mxu0 0
        %1505 = vmatpush1.bf16.msra.mxu0 0
        %1506 = vmatprep.subr.bf16.mxu0 0
        %1507 = vmatpush1.bf16.msra.mxu0 0
        %1508 = vmatprep.subr.bf16.mxu0 0
        %1509 = vmatpush1.bf16.msra.mxu0 0
        %1510 = vmatprep.subr.bf16.mxu0 0
        %1511 = vmatpush1.bf16.msra.mxu0 0
        %1512 = vmatprep.subr.bf16.mxu0 0
        %1513 = vmatpush1.bf16.msra.mxu0 0
        %1514 = vmatprep.subr.bf16.mxu0 0
        %1515 = vmatpush1.bf16.msra.mxu0 0
        %1516 = vmatprep.subr.bf16.mxu0 0
        %1517 = vmatpush1.bf16.msra.mxu0 0
        %1518 = vmatprep.subr.bf16.mxu0 0
        %1519 = vmatpush1.bf16.msra.mxu0 0
        %1520 = vmatprep.subr.bf16.mxu0 0
        %1521 = vmatpush1.bf16.msra.mxu0 0
        %1522 = vmatprep.mubr.bf16.mxu0 0
        %1523 = vmatmul.mubr.bf16.gmra.mrb[0].mxu0 %v1402
        %v1524 = vpop.f32.mrb[0].mxu0
        %v1525 = vadd.f32 %v965, %v1524
        %v1526 = vpop.f32.mrb[0].mxu0
        %v1527 = vadd.f32 %v967, %v1526
        %v1528 = vpop.f32.mrb[0].mxu0
        %v1529 = vadd.f32 %v969, %v1528
        %v1530 = vpop.f32.mrb[0].mxu0
        %v1531 = vadd.f32 %v971, %v1530
        %1532 = vdwg.mxu0
        %1533 = vmatprep.subr.bf16.mxu0 %v647
        %1534 = vmatpush1.bf16.msra.mxu0 %v646
        %1535 = vmatprep.subr.bf16.mxu0 %v672
        %1536 = vmatpush1.bf16.msra.mxu0 %v671
        %1537 = vmatprep.subr.bf16.mxu0 %v697
        %1538 = vmatpush1.bf16.msra.mxu0 %v696
        %1539 = vmatprep.subr.bf16.mxu0 %v722
        %1540 = vmatpush1.bf16.msra.mxu0 %v721
        %1541 = vmatprep.subr.bf16.mxu0 0
        %1542 = vmatpush1.bf16.msra.mxu0 0
        %1543 = vmatprep.subr.bf16.mxu0 0
        %1544 = vmatpush1.bf16.msra.mxu0 0
        %1545 = vmatprep.subr.bf16.mxu0 0
        %1546 = vmatpush1.bf16.msra.mxu0 0
        %1547 = vmatprep.subr.bf16.mxu0 0
        %1548 = vmatpush1.bf16.msra.mxu0 0
        %1549 = vmatprep.subr.bf16.mxu0 0
        %1550 = vmatpush1.bf16.msra.mxu0 0
        %1551 = vmatprep.subr.bf16.mxu0 0
        %1552 = vmatpush1.bf16.msra.mxu0 0
        %1553 = vmatprep.subr.bf16.mxu0 0
        %1554 = vmatpush1.bf16.msra.mxu0 0
        %1555 = vmatprep.subr.bf16.mxu0 0
        %1556 = vmatpush1.bf16.msra.mxu0 0
        %1557 = vmatprep.subr.bf16.mxu0 0
        %1558 = vmatpush1.bf16.msra.mxu0 0
        %1559 = vmatprep.subr.bf16.mxu0 0
        %1560 = vmatpush1.bf16.msra.mxu0 0
        %1561 = vmatprep.subr.bf16.mxu0 0
        %1562 = vmatpush1.bf16.msra.mxu0 0
        %1563 = vmatprep.subr.bf16.mxu0 0
        %1564 = vmatpush1.bf16.msra.mxu0 0
        %1565 = vmatprep.mubr.bf16.mxu0 0
        %1566 = vmatmul.mubr.bf16.gmra.mrb[0].mxu0 %v1402
        %v1567 = vpop.f32.mrb[0].mxu0
        %v1568 = vadd.f32 %v1008, %v1567
        %v1569 = vpop.f32.mrb[0].mxu0
        %v1570 = vadd.f32 %v1010, %v1569
        %v1571 = vpop.f32.mrb[0].mxu0
        %v1572 = vadd.f32 %v1012, %v1571
        %v1573 = vpop.f32.mrb[0].mxu0
        %v1574 = vadd.f32 %v1014, %v1573
        %1575 = vdwg.mxu0
        %1576 = vmatprep.subr.bf16.mxu0 %v649
        %1577 = vmatpush1.bf16.msra.mxu0 %v648
        %1578 = vmatprep.subr.bf16.mxu0 %v674
        %1579 = vmatpush1.bf16.msra.mxu0 %v673
        %1580 = vmatprep.subr.bf16.mxu0 %v699
        %1581 = vmatpush1.bf16.msra.mxu0 %v698
        %1582 = vmatprep.subr.bf16.mxu0 %v724
        %1583 = vmatpush1.bf16.msra.mxu0 %v723
        %1584 = vmatprep.subr.bf16.mxu0 0
        %1585 = vmatpush1.bf16.msra.mxu0 0
        %1586 = vmatprep.subr.bf16.mxu0 0
        %1587 = vmatpush1.bf16.msra.mxu0 0
        %1588 = vmatprep.subr.bf16.mxu0 0
        %1589 = vmatpush1.bf16.msra.mxu0 0
        %1590 = vmatprep.subr.bf16.mxu0 0
        %1591 = vmatpush1.bf16.msra.mxu0 0
        %1592 = vmatprep.subr.bf16.mxu0 0
        %1593 = vmatpush1.bf16.msra.mxu0 0
        %1594 = vmatprep.subr.bf16.mxu0 0
        %1595 = vmatpush1.bf16.msra.mxu0 0
        %1596 = vmatprep.subr.bf16.mxu0 0
        %1597 = vmatpush1.bf16.msra.mxu0 0
        %1598 = vmatprep.subr.bf16.mxu0 0
        %1599 = vmatpush1.bf16.msra.mxu0 0
        %1600 = vmatprep.subr.bf16.mxu0 0
        %1601 = vmatpush1.bf16.msra.mxu0 0
        %1602 = vmatprep.subr.bf16.mxu0 0
        %1603 = vmatpush1.bf16.msra.mxu0 0
        %1604 = vmatprep.subr.bf16.mxu0 0
        %1605 = vmatpush1.bf16.msra.mxu0 0
        %1606 = vmatprep.subr.bf16.mxu0 0
        %1607 = vmatpush1.bf16.msra.mxu0 0
        %1608 = vmatprep.mubr.bf16.mxu0 0
        %1609 = vmatmul.mubr.bf16.gmra.mrb[0].mxu0 %v1402
        %v1610 = vpop.f32.mrb[0].mxu0
        %v1611 = vadd.f32 %v1051, %v1610
        %v1612 = vpop.f32.mrb[0].mxu0
        %v1613 = vadd.f32 %v1053, %v1612
        %v1614 = vpop.f32.mrb[0].mxu0
        %v1615 = vadd.f32 %v1055, %v1614
        %v1616 = vpop.f32.mrb[0].mxu0
        %v1617 = vadd.f32 %v1057, %v1616
        %1618 = vdwg.mxu0
        %1619 = vmatprep.subr.bf16.mxu0 %v651
        %1620 = vmatpush1.bf16.msra.mxu0 %v650
        %1621 = vmatprep.subr.bf16.mxu0 %v676
        %1622 = vmatpush1.bf16.msra.mxu0 %v675
        %1623 = vmatprep.subr.bf16.mxu0 %v701
        %1624 = vmatpush1.bf16.msra.mxu0 %v700
        %1625 = vmatprep.subr.bf16.mxu0 %v726
        %1626 = vmatpush1.bf16.msra.mxu0 %v725
        %1627 = vmatprep.subr.bf16.mxu0 0
        %1628 = vmatpush1.bf16.msra.mxu0 0
        %1629 = vmatprep.subr.bf16.mxu0 0
        %1630 = vmatpush1.bf16.msra.mxu0 0
        %1631 = vmatprep.subr.bf16.mxu0 0
        %1632 = vmatpush1.bf16.msra.mxu0 0
        %1633 = vmatprep.subr.bf16.mxu0 0
        %1634 = vmatpush1.bf16.msra.mxu0 0
        %1635 = vmatprep.subr.bf16.mxu0 0
        %1636 = vmatpush1.bf16.msra.mxu0 0
        %1637 = vmatprep.subr.bf16.mxu0 0
        %1638 = vmatpush1.bf16.msra.mxu0 0
        %1639 = vmatprep.subr.bf16.mxu0 0
        %1640 = vmatpush1.bf16.msra.mxu0 0
        %1641 = vmatprep.subr.bf16.mxu0 0
        %1642 = vmatpush1.bf16.msra.mxu0 0
        %1643 = vmatprep.subr.bf16.mxu0 0
        %1644 = vmatpush1.bf16.msra.mxu0 0
        %1645 = vmatprep.subr.bf16.mxu0 0
        %1646 = vmatpush1.bf16.msra.mxu0 0
        %1647 = vmatprep.subr.bf16.mxu0 0
        %1648 = vmatpush1.bf16.msra.mxu0 0
        %1649 = vmatprep.subr.bf16.mxu0 0
        %1650 = vmatpush1.bf16.msra.mxu0 0
        %1651 = vmatprep.mubr.bf16.mxu0 0
        %1652 = vmatmul.mubr.bf16.gmra.mrb[0].mxu0 %v1402
        %v1653 = vpop.f32.mrb[0].mxu0
        %v1654 = vadd.f32 %v1094, %v1653
        %v1655 = vpop.f32.mrb[0].mxu0
        %v1656 = vadd.f32 %v1096, %v1655
        %v1657 = vpop.f32.mrb[0].mxu0
        %v1658 = vadd.f32 %v1098, %v1657
        %v1659 = vpop.f32.mrb[0].mxu0
        %v1660 = vadd.f32 %v1100, %v1659
        %1661 = vdwg.mxu0
        %1662 = vmatprep.subr.bf16.mxu0 %v653
        %1663 = vmatpush1.bf16.msra.mxu0 %v652
        %1664 = vmatprep.subr.bf16.mxu0 %v678
        %1665 = vmatpush1.bf16.msra.mxu0 %v677
        %1666 = vmatprep.subr.bf16.mxu0 %v703
        %1667 = vmatpush1.bf16.msra.mxu0 %v702
        %1668 = vmatprep.subr.bf16.mxu0 %v728
        %1669 = vmatpush1.bf16.msra.mxu0 %v727
        %1670 = vmatprep.subr.bf16.mxu0 0
        %1671 = vmatpush1.bf16.msra.mxu0 0
        %1672 = vmatprep.subr.bf16.mxu0 0
        %1673 = vmatpush1.bf16.msra.mxu0 0
        %1674 = vmatprep.subr.bf16.mxu0 0
        %1675 = vmatpush1.bf16.msra.mxu0 0
        %1676 = vmatprep.subr.bf16.mxu0 0
        %1677 = vmatpush1.bf16.msra.mxu0 0
        %1678 = vmatprep.subr.bf16.mxu0 0
        %1679 = vmatpush1.bf16.msra.mxu0 0
        %1680 = vmatprep.subr.bf16.mxu0 0
        %1681 = vmatpush1.bf16.msra.mxu0 0
        %1682 = vmatprep.subr.bf16.mxu0 0
        %1683 = vmatpush1.bf16.msra.mxu0 0
        %1684 = vmatprep.subr.bf16.mxu0 0
        %1685 = vmatpush1.bf16.msra.mxu0 0
        %1686 = vmatprep.subr.bf16.mxu0 0
        %1687 = vmatpush1.bf16.msra.mxu0 0
        %1688 = vmatprep.subr.bf16.mxu0 0
        %1689 = vmatpush1.bf16.msra.mxu0 0
        %1690 = vmatprep.subr.bf16.mxu0 0
        %1691 = vmatpush1.bf16.msra.mxu0 0
        %1692 = vmatprep.subr.bf16.mxu0 0
        %1693 = vmatpush1.bf16.msra.mxu0 0
        %1694 = vmatprep.mubr.bf16.mxu0 0
        %1695 = vmatmul.mubr.bf16.gmra.mrb[0].mxu0 %v1402
        %v1696 = vpop.f32.mrb[0].mxu0
        %v1697 = vadd.f32 %v1137, %v1696
        %v1698 = vpop.f32.mrb[0].mxu0
        %v1699 = vadd.f32 %v1139, %v1698
        %v1700 = vpop.f32.mrb[0].mxu0
        %v1701 = vadd.f32 %v1141, %v1700
        %v1702 = vpop.f32.mrb[0].mxu0
        %v1703 = vadd.f32 %v1143, %v1702
        %1704 = vdwg.mxu0
        %1705 = vmatprep.subr.bf16.mxu0 %v655
        %1706 = vmatpush1.bf16.msra.mxu0 %v654
        %1707 = vmatprep.subr.bf16.mxu0 %v680
        %1708 = vmatpush1.bf16.msra.mxu0 %v679
        %1709 = vmatprep.subr.bf16.mxu0 %v705
        %1710 = vmatpush1.bf16.msra.mxu0 %v704
        %1711 = vmatprep.subr.bf16.mxu0 %v730
        %1712 = vmatpush1.bf16.msra.mxu0 %v729
        %1713 = vmatprep.subr.bf16.mxu0 0
        %1714 = vmatpush1.bf16.msra.mxu0 0
        %1715 = vmatprep.subr.bf16.mxu0 0
        %1716 = vmatpush1.bf16.msra.mxu0 0
        %1717 = vmatprep.subr.bf16.mxu0 0
        %1718 = vmatpush1.bf16.msra.mxu0 0
        %1719 = vmatprep.subr.bf16.mxu0 0
        %1720 = vmatpush1.bf16.msra.mxu0 0
        %1721 = vmatprep.subr.bf16.mxu0 0
        %1722 = vmatpush1.bf16.msra.mxu0 0
        %1723 = vmatprep.subr.bf16.mxu0 0
        %1724 = vmatpush1.bf16.msra.mxu0 0
        %1725 = vmatprep.subr.bf16.mxu0 0
        %1726 = vmatpush1.bf16.msra.mxu0 0
        %1727 = vmatprep.subr.bf16.mxu0 0
        %1728 = vmatpush1.bf16.msra.mxu0 0
        %1729 = vmatprep.subr.bf16.mxu0 0
        %1730 = vmatpush1.bf16.msra.mxu0 0
        %1731 = vmatprep.subr.bf16.mxu0 0
        %1732 = vmatpush1.bf16.msra.mxu0 0
        %1733 = vmatprep.subr.bf16.mxu0 0
        %1734 = vmatpush1.bf16.msra.mxu0 0
        %1735 = vmatprep.subr.bf16.mxu0 0
        %1736 = vmatpush1.bf16.msra.mxu0 0
        %1737 = vmatprep.mubr.bf16.mxu0 0
        %1738 = vmatmul.mubr.bf16.gmra.mrb[0].mxu0 %v1402
        %v1739 = vpop.f32.mrb[0].mxu0
        %v1740 = vadd.f32 %v1180, %v1739
        %v1741 = vpop.f32.mrb[0].mxu0
        %v1742 = vadd.f32 %v1182, %v1741
        %v1743 = vpop.f32.mrb[0].mxu0
        %v1744 = vadd.f32 %v1184, %v1743
        %v1745 = vpop.f32.mrb[0].mxu0
        %v1746 = vadd.f32 %v1186, %v1745
        %1747 = vdwg.mxu0
        %1748 = vmatprep.subr.bf16.mxu0 %v657
        %1749 = vmatpush1.bf16.msra.mxu0 %v656
        %1750 = vmatprep.subr.bf16.mxu0 %v682
        %1751 = vmatpush1.bf16.msra.mxu0 %v681
        %1752 = vmatprep.subr.bf16.mxu0 %v707
        %1753 = vmatpush1.bf16.msra.mxu0 %v706
        %1754 = vmatprep.subr.bf16.mxu0 %v732
        %1755 = vmatpush1.bf16.msra.mxu0 %v731
        %1756 = vmatprep.subr.bf16.mxu0 0
        %1757 = vmatpush1.bf16.msra.mxu0 0
        %1758 = vmatprep.subr.bf16.mxu0 0
        %1759 = vmatpush1.bf16.msra.mxu0 0
        %1760 = vmatprep.subr.bf16.mxu0 0
        %1761 = vmatpush1.bf16.msra.mxu0 0
        %1762 = vmatprep.subr.bf16.mxu0 0
        %1763 = vmatpush1.bf16.msra.mxu0 0
        %1764 = vmatprep.subr.bf16.mxu0 0
        %1765 = vmatpush1.bf16.msra.mxu0 0
        %1766 = vmatprep.subr.bf16.mxu0 0
        %1767 = vmatpush1.bf16.msra.mxu0 0
        %1768 = vmatprep.subr.bf16.mxu0 0
        %1769 = vmatpush1.bf16.msra.mxu0 0
        %1770 = vmatprep.subr.bf16.mxu0 0
        %1771 = vmatpush1.bf16.msra.mxu0 0
        %1772 = vmatprep.subr.bf16.mxu0 0
        %1773 = vmatpush1.bf16.msra.mxu0 0
        %1774 = vmatprep.subr.bf16.mxu0 0
        %1775 = vmatpush1.bf16.msra.mxu0 0
        %1776 = vmatprep.subr.bf16.mxu0 0
        %1777 = vmatpush1.bf16.msra.mxu0 0
        %1778 = vmatprep.subr.bf16.mxu0 0
        %1779 = vmatpush1.bf16.msra.mxu0 0
        %1780 = vmatprep.mubr.bf16.mxu0 0
        %1781 = vmatmul.mubr.bf16.gmra.mrb[0].mxu0 %v1402
        %v1782 = vpop.f32.mrb[0].mxu0
        %v1783 = vadd.f32 %v1223, %v1782
        %v1784 = vpop.f32.mrb[0].mxu0
        %v1785 = vadd.f32 %v1225, %v1784
        %v1786 = vpop.f32.mrb[0].mxu0
        %v1787 = vadd.f32 %v1227, %v1786
        %v1788 = vpop.f32.mrb[0].mxu0
        %v1789 = vadd.f32 %v1229, %v1788
        %1790 = vdwg.mxu0
        %1791 = vmatprep.subr.bf16.mxu0 %v659
        %1792 = vmatpush1.bf16.msra.mxu0 %v658
        %1793 = vmatprep.subr.bf16.mxu0 %v684
        %1794 = vmatpush1.bf16.msra.mxu0 %v683
        %1795 = vmatprep.subr.bf16.mxu0 %v709
        %1796 = vmatpush1.bf16.msra.mxu0 %v708
        %1797 = vmatprep.subr.bf16.mxu0 %v734
        %1798 = vmatpush1.bf16.msra.mxu0 %v733
        %1799 = vmatprep.subr.bf16.mxu0 0
        %1800 = vmatpush1.bf16.msra.mxu0 0
        %1801 = vmatprep.subr.bf16.mxu0 0
        %1802 = vmatpush1.bf16.msra.mxu0 0
        %1803 = vmatprep.subr.bf16.mxu0 0
        %1804 = vmatpush1.bf16.msra.mxu0 0
        %1805 = vmatprep.subr.bf16.mxu0 0
        %1806 = vmatpush1.bf16.msra.mxu0 0
        %1807 = vmatprep.subr.bf16.mxu0 0
        %1808 = vmatpush1.bf16.msra.mxu0 0
        %1809 = vmatprep.subr.bf16.mxu0 0
        %1810 = vmatpush1.bf16.msra.mxu0 0
        %1811 = vmatprep.subr.bf16.mxu0 0
        %1812 = vmatpush1.bf16.msra.mxu0 0
        %1813 = vmatprep.subr.bf16.mxu0 0
        %1814 = vmatpush1.bf16.msra.mxu0 0
        %1815 = vmatprep.subr.bf16.mxu0 0
        %1816 = vmatpush1.bf16.msra.mxu0 0
        %1817 = vmatprep.subr.bf16.mxu0 0
        %1818 = vmatpush1.bf16.msra.mxu0 0
        %1819 = vmatprep.subr.bf16.mxu0 0
        %1820 = vmatpush1.bf16.msra.mxu0 0
        %1821 = vmatprep.subr.bf16.mxu0 0
        %1822 = vmatpush1.bf16.msra.mxu0 0
        %1823 = vmatprep.mubr.bf16.mxu0 0
        %1824 = vmatmul.mubr.bf16.gmra.mrb[0].mxu0 %v1402
        %v1825 = vpop.f32.mrb[0].mxu0
        %v1826 = vadd.f32 %v1266, %v1825
        %v1827 = vpop.f32.mrb[0].mxu0
        %v1828 = vadd.f32 %v1268, %v1827
        %v1829 = vpop.f32.mrb[0].mxu0
        %v1830 = vadd.f32 %v1270, %v1829
        %v1831 = vpop.f32.mrb[0].mxu0
        %v1832 = vadd.f32 %v1272, %v1831
        %1833 = vdwg.mxu0
        %1834 = vmatprep.subr.bf16.mxu0 %v661
        %1835 = vmatpush1.bf16.msra.mxu0 %v660
        %1836 = vmatprep.subr.bf16.mxu0 %v686
        %1837 = vmatpush1.bf16.msra.mxu0 %v685
        %1838 = vmatprep.subr.bf16.mxu0 %v711
        %1839 = vmatpush1.bf16.msra.mxu0 %v710
        %1840 = vmatprep.subr.bf16.mxu0 %v736
        %1841 = vmatpush1.bf16.msra.mxu0 %v735
        %1842 = vmatprep.subr.bf16.mxu0 0
        %1843 = vmatpush1.bf16.msra.mxu0 0
        %1844 = vmatprep.subr.bf16.mxu0 0
        %1845 = vmatpush1.bf16.msra.mxu0 0
        %1846 = vmatprep.subr.bf16.mxu0 0
        %1847 = vmatpush1.bf16.msra.mxu0 0
        %1848 = vmatprep.subr.bf16.mxu0 0
        %1849 = vmatpush1.bf16.msra.mxu0 0
        %1850 = vmatprep.subr.bf16.mxu0 0
        %1851 = vmatpush1.bf16.msra.mxu0 0
        %1852 = vmatprep.subr.bf16.mxu0 0
        %1853 = vmatpush1.bf16.msra.mxu0 0
        %1854 = vmatprep.subr.bf16.mxu0 0
        %1855 = vmatpush1.bf16.msra.mxu0 0
        %1856 = vmatprep.subr.bf16.mxu0 0
        %1857 = vmatpush1.bf16.msra.mxu0 0
        %1858 = vmatprep.subr.bf16.mxu0 0
        %1859 = vmatpush1.bf16.msra.mxu0 0
        %1860 = vmatprep.subr.bf16.mxu0 0
        %1861 = vmatpush1.bf16.msra.mxu0 0
        %1862 = vmatprep.subr.bf16.mxu0 0
        %1863 = vmatpush1.bf16.msra.mxu0 0
        %1864 = vmatprep.subr.bf16.mxu0 0
        %1865 = vmatpush1.bf16.msra.mxu0 0
        %1866 = vmatprep.mubr.bf16.mxu0 0
        %1867 = vmatmul.mubr.bf16.gmra.mrb[0].mxu0 %v1402
        %v1868 = vpop.f32.mrb[0].mxu0
        %v1869 = vadd.f32 %v1309, %v1868
        %v1870 = vpop.f32.mrb[0].mxu0
        %v1871 = vadd.f32 %v1311, %v1870
        %v1872 = vpop.f32.mrb[0].mxu0
        %v1873 = vadd.f32 %v1313, %v1872
        %v1874 = vpop.f32.mrb[0].mxu0
        %v1875 = vadd.f32 %v1315, %v1874
        %1876 = vdwg.mxu0
        %1877 = vmatprep.subr.bf16.mxu0 %v663
        %1878 = vmatpush1.bf16.msra.mxu0 %v662
        %1879 = vmatprep.subr.bf16.mxu0 %v688
        %1880 = vmatpush1.bf16.msra.mxu0 %v687
        %1881 = vmatprep.subr.bf16.mxu0 %v713
        %1882 = vmatpush1.bf16.msra.mxu0 %v712
        %1883 = vmatprep.subr.bf16.mxu0 %v738
        %1884 = vmatpush1.bf16.msra.mxu0 %v737
        %1885 = vmatprep.subr.bf16.mxu0 0
        %1886 = vmatpush1.bf16.msra.mxu0 0
        %1887 = vmatprep.subr.bf16.mxu0 0
        %1888 = vmatpush1.bf16.msra.mxu0 0
        %1889 = vmatprep.subr.bf16.mxu0 0
        %1890 = vmatpush1.bf16.msra.mxu0 0
        %1891 = vmatprep.subr.bf16.mxu0 0
        %1892 = vmatpush1.bf16.msra.mxu0 0
        %1893 = vmatprep.subr.bf16.mxu0 0
        %1894 = vmatpush1.bf16.msra.mxu0 0
        %1895 = vmatprep.subr.bf16.mxu0 0
        %1896 = vmatpush1.bf16.msra.mxu0 0
        %1897 = vmatprep.subr.bf16.mxu0 0
        %1898 = vmatpush1.bf16.msra.mxu0 0
        %1899 = vmatprep.subr.bf16.mxu0 0
        %1900 = vmatpush1.bf16.msra.mxu0 0
        %1901 = vmatprep.subr.bf16.mxu0 0
        %1902 = vmatpush1.bf16.msra.mxu0 0
        %1903 = vmatprep.subr.bf16.mxu0 0
        %1904 = vmatpush1.bf16.msra.mxu0 0
        %1905 = vmatprep.subr.bf16.mxu0 0
        %1906 = vmatpush1.bf16.msra.mxu0 0
        %1907 = vmatprep.subr.bf16.mxu0 0
        %1908 = vmatpush1.bf16.msra.mxu0 0
        %1909 = vmatprep.mubr.bf16.mxu0 0
        %1910 = vmatmul.mubr.bf16.gmra.mrb[0].mxu0 %v1402
        %v1911 = vpop.f32.mrb[0].mxu0
        %v1912 = vadd.f32 %v1352, %v1911
        %v1913 = vpop.f32.mrb[0].mxu0
        %v1914 = vadd.f32 %v1354, %v1913
        %v1915 = vpop.f32.mrb[0].mxu0
        %v1916 = vadd.f32 %v1356, %v1915
        %v1917 = vpop.f32.mrb[0].mxu0
        %v1918 = vadd.f32 %v1358, %v1917
        %1919 = vdwg.mxu0
        %1920 = vmatprep.subr.bf16.mxu0 0
        %1921 = vmatpush1.bf16.msra.mxu0 %v664
        %1922 = vmatprep.subr.bf16.mxu0 0
        %1923 = vmatpush1.bf16.msra.mxu0 %v689
        %1924 = vmatprep.subr.bf16.mxu0 0
        %1925 = vmatpush1.bf16.msra.mxu0 %v714
        %1926 = vmatprep.subr.bf16.mxu0 0
        %1927 = vmatpush1.bf16.msra.mxu0 %v739
        %1928 = vmatprep.subr.bf16.mxu0 0
        %1929 = vmatpush1.bf16.msra.mxu0 0
        %1930 = vmatprep.subr.bf16.mxu0 0
        %1931 = vmatpush1.bf16.msra.mxu0 0
        %1932 = vmatprep.subr.bf16.mxu0 0
        %1933 = vmatpush1.bf16.msra.mxu0 0
        %1934 = vmatprep.subr.bf16.mxu0 0
        %1935 = vmatpush1.bf16.msra.mxu0 0
        %1936 = vmatprep.subr.bf16.mxu0 0
        %1937 = vmatpush1.bf16.msra.mxu0 0
        %1938 = vmatprep.subr.bf16.mxu0 0
        %1939 = vmatpush1.bf16.msra.mxu0 0
        %1940 = vmatprep.subr.bf16.mxu0 0
        %1941 = vmatpush1.bf16.msra.mxu0 0
        %1942 = vmatprep.subr.bf16.mxu0 0
        %1943 = vmatpush1.bf16.msra.mxu0 0
        %1944 = vmatprep.subr.bf16.mxu0 0
        %1945 = vmatpush1.bf16.msra.mxu0 0
        %1946 = vmatprep.subr.bf16.mxu0 0
        %1947 = vmatpush1.bf16.msra.mxu0 0
        %1948 = vmatprep.subr.bf16.mxu0 0
        %1949 = vmatpush1.bf16.msra.mxu0 0
        %1950 = vmatprep.subr.bf16.mxu0 0
        %1951 = vmatpush1.bf16.msra.mxu0 0
        %1952 = vmatprep.mubr.bf16.mxu0 0
        %1953 = vmatmul.mubr.bf16.gmra.mrb[0].mxu0 %v1402
        %v1954 = vpop.f32.mrb[0].mxu0
        %v1955 = vadd.f32 %v1395, %v1954
        %v1956 = vpop.f32.mrb[0].mxu0
        %v1957 = vpop.f32.mrb[0].mxu0
        %v1958 = vadd.f32 %v1398, %v1957
        %v1959 = vpop.f32.mrb[0].mxu0
        %1960 = vdwg.mxu0
        %v1962 = vsel %vm840, %v231, 0
        %1964 = vmatprep.subr.bf16.mxu0 %v641
        %1965 = vmatpush1.bf16.msra.mxu0 %v640
        %1966 = vmatprep.subr.bf16.mxu0 %v666
        %1967 = vmatpush1.bf16.msra.mxu0 %v665
        %1968 = vmatprep.subr.bf16.mxu0 %v691
        %1969 = vmatpush1.bf16.msra.mxu0 %v690
        %1970 = vmatprep.subr.bf16.mxu0 %v716
        %1971 = vmatpush1.bf16.msra.mxu0 %v715
        %1972 = vmatprep.subr.bf16.mxu0 0
        %1973 = vmatpush1.bf16.msra.mxu0 0
        %1974 = vmatprep.subr.bf16.mxu0 0
        %1975 = vmatpush1.bf16.msra.mxu0 0
        %1976 = vmatprep.subr.bf16.mxu0 0
        %1977 = vmatpush1.bf16.msra.mxu0 0
        %1978 = vmatprep.subr.bf16.mxu0 0
        %1979 = vmatpush1.bf16.msra.mxu0 0
        %1980 = vmatprep.subr.bf16.mxu0 0
        %1981 = vmatpush1.bf16.msra.mxu0 0
        %1982 = vmatprep.subr.bf16.mxu0 0
        %1983 = vmatpush1.bf16.msra.mxu0 0
        %1984 = vmatprep.subr.bf16.mxu0 0
        %1985 = vmatpush1.bf16.msra.mxu0 0
        %1986 = vmatprep.subr.bf16.mxu0 0
        %1987 = vmatpush1.bf16.msra.mxu0 0
        %1988 = vmatprep.subr.bf16.mxu0 0
        %1989 = vmatpush1.bf16.msra.mxu0 0
        %1990 = vmatprep.subr.bf16.mxu0 0
        %1991 = vmatpush1.bf16.msra.mxu0 0
        %1992 = vmatprep.subr.bf16.mxu0 0
        %1993 = vmatpush1.bf16.msra.mxu0 0
        %1994 = vmatprep.subr.bf16.mxu0 0
        %1995 = vmatpush1.bf16.msra.mxu0 0
        %1996 = vmatprep.mubr.bf16.mxu0 0
        %1997 = vmatmul.mubr.bf16.gmra.mrb[0].mxu0 %v1962
        %v1998 = vpop.f32.mrb[0].mxu0
        %v1999 = vadd.f32 0.0, %v1998
        %v2000 = vpop.f32.mrb[0].mxu0
        %v2001 = vadd.f32 0.0, %v2000
        %v2002 = vpop.f32.mrb[0].mxu0
        %v2003 = vadd.f32 0.0, %v2002
        %v2004 = vpop.f32.mrb[0].mxu0
        %v2005 = vadd.f32 0.0, %v2004
        %2006 = vdwg.mxu0
        %2007 = vmatprep.subr.bf16.mxu0 %v643
        %2008 = vmatpush1.bf16.msra.mxu0 %v642
        %2009 = vmatprep.subr.bf16.mxu0 %v668
        %2010 = vmatpush1.bf16.msra.mxu0 %v667
        %2011 = vmatprep.subr.bf16.mxu0 %v693
        %2012 = vmatpush1.bf16.msra.mxu0 %v692
        %2013 = vmatprep.subr.bf16.mxu0 %v718
        %2014 = vmatpush1.bf16.msra.mxu0 %v717
        %2015 = vmatprep.subr.bf16.mxu0 0
        %2016 = vmatpush1.bf16.msra.mxu0 0
        %2017 = vmatprep.subr.bf16.mxu0 0
        %2018 = vmatpush1.bf16.msra.mxu0 0
        %2019 = vmatprep.subr.bf16.mxu0 0
        %2020 = vmatpush1.bf16.msra.mxu0 0
        %2021 = vmatprep.subr.bf16.mxu0 0
        %2022 = vmatpush1.bf16.msra.mxu0 0
        %2023 = vmatprep.subr.bf16.mxu0 0
        %2024 = vmatpush1.bf16.msra.mxu0 0
        %2025 = vmatprep.subr.bf16.mxu0 0
        %2026 = vmatpush1.bf16.msra.mxu0 0
        %2027 = vmatprep.subr.bf16.mxu0 0
        %2028 = vmatpush1.bf16.msra.mxu0 0
        %2029 = vmatprep.subr.bf16.mxu0 0
        %2030 = vmatpush1.bf16.msra.mxu0 0
        %2031 = vmatprep.subr.bf16.mxu0 0
        %2032 = vmatpush1.bf16.msra.mxu0 0
        %2033 = vmatprep.subr.bf16.mxu0 0
        %2034 = vmatpush1.bf16.msra.mxu0 0
        %2035 = vmatprep.subr.bf16.mxu0 0
        %2036 = vmatpush1.bf16.msra.mxu0 0
        %2037 = vmatprep.subr.bf16.mxu0 0
        %2038 = vmatpush1.bf16.msra.mxu0 0
        %2039 = vmatprep.mubr.bf16.mxu0 0
        %2040 = vmatmul.mubr.bf16.gmra.mrb[0].mxu0 %v1962
        %v2041 = vpop.f32.mrb[0].mxu0
        %v2042 = vadd.f32 0.0, %v2041
        %v2043 = vpop.f32.mrb[0].mxu0
        %v2044 = vadd.f32 0.0, %v2043
        %v2045 = vpop.f32.mrb[0].mxu0
        %v2046 = vadd.f32 0.0, %v2045
        %v2047 = vpop.f32.mrb[0].mxu0
        %v2048 = vadd.f32 0.0, %v2047
        %2049 = vdwg.mxu0
        %2050 = vmatprep.subr.bf16.mxu0 %v645
        %2051 = vmatpush1.bf16.msra.mxu0 %v644
        %2052 = vmatprep.subr.bf16.mxu0 %v670
        %2053 = vmatpush1.bf16.msra.mxu0 %v669
        %2054 = vmatprep.subr.bf16.mxu0 %v695
        %2055 = vmatpush1.bf16.msra.mxu0 %v694
        %2056 = vmatprep.subr.bf16.mxu0 %v720
        %2057 = vmatpush1.bf16.msra.mxu0 %v719
        %2058 = vmatprep.subr.bf16.mxu0 0
        %2059 = vmatpush1.bf16.msra.mxu0 0
        %2060 = vmatprep.subr.bf16.mxu0 0
        %2061 = vmatpush1.bf16.msra.mxu0 0
        %2062 = vmatprep.subr.bf16.mxu0 0
        %2063 = vmatpush1.bf16.msra.mxu0 0
        %2064 = vmatprep.subr.bf16.mxu0 0
        %2065 = vmatpush1.bf16.msra.mxu0 0
        %2066 = vmatprep.subr.bf16.mxu0 0
        %2067 = vmatpush1.bf16.msra.mxu0 0
        %2068 = vmatprep.subr.bf16.mxu0 0
        %2069 = vmatpush1.bf16.msra.mxu0 0
        %2070 = vmatprep.subr.bf16.mxu0 0
        %2071 = vmatpush1.bf16.msra.mxu0 0
        %2072 = vmatprep.subr.bf16.mxu0 0
        %2073 = vmatpush1.bf16.msra.mxu0 0
        %2074 = vmatprep.subr.bf16.mxu0 0
        %2075 = vmatpush1.bf16.msra.mxu0 0
        %2076 = vmatprep.subr.bf16.mxu0 0
        %2077 = vmatpush1.bf16.msra.mxu0 0
        %2078 = vmatprep.subr.bf16.mxu0 0
        %2079 = vmatpush1.bf16.msra.mxu0 0
        %2080 = vmatprep.subr.bf16.mxu0 0
        %2081 = vmatpush1.bf16.msra.mxu0 0
        %2082 = vmatprep.mubr.bf16.mxu0 0
        %2083 = vmatmul.mubr.bf16.gmra.mrb[0].mxu0 %v1962
        %v2084 = vpop.f32.mrb[0].mxu0
        %v2085 = vadd.f32 0.0, %v2084
        %v2086 = vpop.f32.mrb[0].mxu0
        %v2087 = vadd.f32 0.0, %v2086
        %v2088 = vpop.f32.mrb[0].mxu0
        %v2089 = vadd.f32 0.0, %v2088
        %v2090 = vpop.f32.mrb[0].mxu0
        %v2091 = vadd.f32 0.0, %v2090
        %2092 = vdwg.mxu0
        %2093 = vmatprep.subr.bf16.mxu0 %v647
        %2094 = vmatpush1.bf16.msra.mxu0 %v646
        %2095 = vmatprep.subr.bf16.mxu0 %v672
        %2096 = vmatpush1.bf16.msra.mxu0 %v671
        %2097 = vmatprep.subr.bf16.mxu0 %v697
        %2098 = vmatpush1.bf16.msra.mxu0 %v696
        %2099 = vmatprep.subr.bf16.mxu0 %v722
        %2100 = vmatpush1.bf16.msra.mxu0 %v721
        %2101 = vmatprep.subr.bf16.mxu0 0
        %2102 = vmatpush1.bf16.msra.mxu0 0
        %2103 = vmatprep.subr.bf16.mxu0 0
        %2104 = vmatpush1.bf16.msra.mxu0 0
        %2105 = vmatprep.subr.bf16.mxu0 0
        %2106 = vmatpush1.bf16.msra.mxu0 0
        %2107 = vmatprep.subr.bf16.mxu0 0
        %2108 = vmatpush1.bf16.msra.mxu0 0
        %2109 = vmatprep.subr.bf16.mxu0 0
        %2110 = vmatpush1.bf16.msra.mxu0 0
        %2111 = vmatprep.subr.bf16.mxu0 0
        %2112 = vmatpush1.bf16.msra.mxu0 0
        %2113 = vmatprep.subr.bf16.mxu0 0
        %2114 = vmatpush1.bf16.msra.mxu0 0
        %2115 = vmatprep.subr.bf16.mxu0 0
        %2116 = vmatpush1.bf16.msra.mxu0 0
        %2117 = vmatprep.subr.bf16.mxu0 0
        %2118 = vmatpush1.bf16.msra.mxu0 0
        %2119 = vmatprep.subr.bf16.mxu0 0
        %2120 = vmatpush1.bf16.msra.mxu0 0
        %2121 = vmatprep.subr.bf16.mxu0 0
        %2122 = vmatpush1.bf16.msra.mxu0 0
        %2123 = vmatprep.subr.bf16.mxu0 0
        %2124 = vmatpush1.bf16.msra.mxu0 0
        %2125 = vmatprep.mubr.bf16.mxu0 0
        %2126 = vmatmul.mubr.bf16.gmra.mrb[0].mxu0 %v1962
        %v2127 = vpop.f32.mrb[0].mxu0
        %v2128 = vadd.f32 0.0, %v2127
        %v2129 = vpop.f32.mrb[0].mxu0
        %v2130 = vadd.f32 0.0, %v2129
        %v2131 = vpop.f32.mrb[0].mxu0
        %v2132 = vadd.f32 0.0, %v2131
        %v2133 = vpop.f32.mrb[0].mxu0
        %v2134 = vadd.f32 0.0, %v2133
        %2135 = vdwg.mxu0
        %2136 = vmatprep.subr.bf16.mxu0 %v649
        %2137 = vmatpush1.bf16.msra.mxu0 %v648
        %2138 = vmatprep.subr.bf16.mxu0 %v674
        %2139 = vmatpush1.bf16.msra.mxu0 %v673
        %2140 = vmatprep.subr.bf16.mxu0 %v699
        %2141 = vmatpush1.bf16.msra.mxu0 %v698
        %2142 = vmatprep.subr.bf16.mxu0 %v724
        %2143 = vmatpush1.bf16.msra.mxu0 %v723
        %2144 = vmatprep.subr.bf16.mxu0 0
        %2145 = vmatpush1.bf16.msra.mxu0 0
        %2146 = vmatprep.subr.bf16.mxu0 0
        %2147 = vmatpush1.bf16.msra.mxu0 0
        %2148 = vmatprep.subr.bf16.mxu0 0
        %2149 = vmatpush1.bf16.msra.mxu0 0
        %2150 = vmatprep.subr.bf16.mxu0 0
        %2151 = vmatpush1.bf16.msra.mxu0 0
        %2152 = vmatprep.subr.bf16.mxu0 0
        %2153 = vmatpush1.bf16.msra.mxu0 0
        %2154 = vmatprep.subr.bf16.mxu0 0
        %2155 = vmatpush1.bf16.msra.mxu0 0
        %2156 = vmatprep.subr.bf16.mxu0 0
        %2157 = vmatpush1.bf16.msra.mxu0 0
        %2158 = vmatprep.subr.bf16.mxu0 0
        %2159 = vmatpush1.bf16.msra.mxu0 0
        %2160 = vmatprep.subr.bf16.mxu0 0
        %2161 = vmatpush1.bf16.msra.mxu0 0
        %2162 = vmatprep.subr.bf16.mxu0 0
        %2163 = vmatpush1.bf16.msra.mxu0 0
        %2164 = vmatprep.subr.bf16.mxu0 0
        %2165 = vmatpush1.bf16.msra.mxu0 0
        %2166 = vmatprep.subr.bf16.mxu0 0
        %2167 = vmatpush1.bf16.msra.mxu0 0
        %2168 = vmatprep.mubr.bf16.mxu0 0
        %2169 = vmatmul.mubr.bf16.gmra.mrb[0].mxu0 %v1962
        %v2170 = vpop.f32.mrb[0].mxu0
        %v2171 = vadd.f32 0.0, %v2170
        %v2172 = vpop.f32.mrb[0].mxu0
        %v2173 = vadd.f32 0.0, %v2172
        %v2174 = vpop.f32.mrb[0].mxu0
        %v2175 = vadd.f32 0.0, %v2174
        %v2176 = vpop.f32.mrb[0].mxu0
        %v2177 = vadd.f32 0.0, %v2176
        %2178 = vdwg.mxu0
        %2179 = vmatprep.subr.bf16.mxu0 %v651
        %2180 = vmatpush1.bf16.msra.mxu0 %v650
        %2181 = vmatprep.subr.bf16.mxu0 %v676
        %2182 = vmatpush1.bf16.msra.mxu0 %v675
        %2183 = vmatprep.subr.bf16.mxu0 %v701
        %2184 = vmatpush1.bf16.msra.mxu0 %v700
        %2185 = vmatprep.subr.bf16.mxu0 %v726
        %2186 = vmatpush1.bf16.msra.mxu0 %v725
        %2187 = vmatprep.subr.bf16.mxu0 0
        %2188 = vmatpush1.bf16.msra.mxu0 0
        %2189 = vmatprep.subr.bf16.mxu0 0
        %2190 = vmatpush1.bf16.msra.mxu0 0
        %2191 = vmatprep.subr.bf16.mxu0 0
        %2192 = vmatpush1.bf16.msra.mxu0 0
        %2193 = vmatprep.subr.bf16.mxu0 0
        %2194 = vmatpush1.bf16.msra.mxu0 0
        %2195 = vmatprep.subr.bf16.mxu0 0
        %2196 = vmatpush1.bf16.msra.mxu0 0
        %2197 = vmatprep.subr.bf16.mxu0 0
        %2198 = vmatpush1.bf16.msra.mxu0 0
        %2199 = vmatprep.subr.bf16.mxu0 0
        %2200 = vmatpush1.bf16.msra.mxu0 0
        %2201 = vmatprep.subr.bf16.mxu0 0
        %2202 = vmatpush1.bf16.msra.mxu0 0
        %2203 = vmatprep.subr.bf16.mxu0 0
        %2204 = vmatpush1.bf16.msra.mxu0 0
        %2205 = vmatprep.subr.bf16.mxu0 0
        %2206 = vmatpush1.bf16.msra.mxu0 0
        %2207 = vmatprep.subr.bf16.mxu0 0
        %2208 = vmatpush1.bf16.msra.mxu0 0
        %2209 = vmatprep.subr.bf16.mxu0 0
        %2210 = vmatpush1.bf16.msra.mxu0 0
        %2211 = vmatprep.mubr.bf16.mxu0 0
        %2212 = vmatmul.mubr.bf16.gmra.mrb[0].mxu0 %v1962
        %v2213 = vpop.f32.mrb[0].mxu0
        %v2214 = vadd.f32 0.0, %v2213
        %v2215 = vpop.f32.mrb[0].mxu0
        %v2216 = vadd.f32 0.0, %v2215
        %v2217 = vpop.f32.mrb[0].mxu0
        %v2218 = vadd.f32 0.0, %v2217
        %v2219 = vpop.f32.mrb[0].mxu0
        %v2220 = vadd.f32 0.0, %v2219
        %2221 = vdwg.mxu0
        %2222 = vmatprep.subr.bf16.mxu0 %v653
        %2223 = vmatpush1.bf16.msra.mxu0 %v652
        %2224 = vmatprep.subr.bf16.mxu0 %v678
        %2225 = vmatpush1.bf16.msra.mxu0 %v677
        %2226 = vmatprep.subr.bf16.mxu0 %v703
        %2227 = vmatpush1.bf16.msra.mxu0 %v702
        %2228 = vmatprep.subr.bf16.mxu0 %v728
        %2229 = vmatpush1.bf16.msra.mxu0 %v727
        %2230 = vmatprep.subr.bf16.mxu0 0
        %2231 = vmatpush1.bf16.msra.mxu0 0
        %2232 = vmatprep.subr.bf16.mxu0 0
        %2233 = vmatpush1.bf16.msra.mxu0 0
        %2234 = vmatprep.subr.bf16.mxu0 0
        %2235 = vmatpush1.bf16.msra.mxu0 0
        %2236 = vmatprep.subr.bf16.mxu0 0
        %2237 = vmatpush1.bf16.msra.mxu0 0
        %2238 = vmatprep.subr.bf16.mxu0 0
        %2239 = vmatpush1.bf16.msra.mxu0 0
        %2240 = vmatprep.subr.bf16.mxu0 0
        %2241 = vmatpush1.bf16.msra.mxu0 0
        %2242 = vmatprep.subr.bf16.mxu0 0
        %2243 = vmatpush1.bf16.msra.mxu0 0
        %2244 = vmatprep.subr.bf16.mxu0 0
        %2245 = vmatpush1.bf16.msra.mxu0 0
        %2246 = vmatprep.subr.bf16.mxu0 0
        %2247 = vmatpush1.bf16.msra.mxu0 0
        %2248 = vmatprep.subr.bf16.mxu0 0
        %2249 = vmatpush1.bf16.msra.mxu0 0
        %2250 = vmatprep.subr.bf16.mxu0 0
        %2251 = vmatpush1.bf16.msra.mxu0 0
        %2252 = vmatprep.subr.bf16.mxu0 0
        %2253 = vmatpush1.bf16.msra.mxu0 0
        %2254 = vmatprep.mubr.bf16.mxu0 0
        %2255 = vmatmul.mubr.bf16.gmra.mrb[0].mxu0 %v1962
        %v2256 = vpop.f32.mrb[0].mxu0
        %v2257 = vadd.f32 0.0, %v2256
        %v2258 = vpop.f32.mrb[0].mxu0
        %v2259 = vadd.f32 0.0, %v2258
        %v2260 = vpop.f32.mrb[0].mxu0
        %v2261 = vadd.f32 0.0, %v2260
        %v2262 = vpop.f32.mrb[0].mxu0
        %v2263 = vadd.f32 0.0, %v2262
        %2264 = vdwg.mxu0
        %2265 = vmatprep.subr.bf16.mxu0 %v655
        %2266 = vmatpush1.bf16.msra.mxu0 %v654
        %2267 = vmatprep.subr.bf16.mxu0 %v680
        %2268 = vmatpush1.bf16.msra.mxu0 %v679
        %2269 = vmatprep.subr.bf16.mxu0 %v705
        %2270 = vmatpush1.bf16.msra.mxu0 %v704
        %2271 = vmatprep.subr.bf16.mxu0 %v730
        %2272 = vmatpush1.bf16.msra.mxu0 %v729
        %2273 = vmatprep.subr.bf16.mxu0 0
        %2274 = vmatpush1.bf16.msra.mxu0 0
        %2275 = vmatprep.subr.bf16.mxu0 0
        %2276 = vmatpush1.bf16.msra.mxu0 0
        %2277 = vmatprep.subr.bf16.mxu0 0
        %2278 = vmatpush1.bf16.msra.mxu0 0
        %2279 = vmatprep.subr.bf16.mxu0 0
        %2280 = vmatpush1.bf16.msra.mxu0 0
        %2281 = vmatprep.subr.bf16.mxu0 0
        %2282 = vmatpush1.bf16.msra.mxu0 0
        %2283 = vmatprep.subr.bf16.mxu0 0
        %2284 = vmatpush1.bf16.msra.mxu0 0
        %2285 = vmatprep.subr.bf16.mxu0 0
        %2286 = vmatpush1.bf16.msra.mxu0 0
        %2287 = vmatprep.subr.bf16.mxu0 0
        %2288 = vmatpush1.bf16.msra.mxu0 0
        %2289 = vmatprep.subr.bf16.mxu0 0
        %2290 = vmatpush1.bf16.msra.mxu0 0
        %2291 = vmatprep.subr.bf16.mxu0 0
        %2292 = vmatpush1.bf16.msra.mxu0 0
        %2293 = vmatprep.subr.bf16.mxu0 0
        %2294 = vmatpush1.bf16.msra.mxu0 0
        %2295 = vmatprep.subr.bf16.mxu0 0
        %2296 = vmatpush1.bf16.msra.mxu0 0
        %2297 = vmatprep.mubr.bf16.mxu0 0
        %2298 = vmatmul.mubr.bf16.gmra.mrb[0].mxu0 %v1962
        %v2299 = vpop.f32.mrb[0].mxu0
        %v2300 = vadd.f32 0.0, %v2299
        %v2301 = vpop.f32.mrb[0].mxu0
        %v2302 = vadd.f32 0.0, %v2301
        %v2303 = vpop.f32.mrb[0].mxu0
        %v2304 = vadd.f32 0.0, %v2303
        %v2305 = vpop.f32.mrb[0].mxu0
        %v2306 = vadd.f32 0.0, %v2305
        %2307 = vdwg.mxu0
        %2308 = vmatprep.subr.bf16.mxu0 %v657
        %2309 = vmatpush1.bf16.msra.mxu0 %v656
        %2310 = vmatprep.subr.bf16.mxu0 %v682
        %2311 = vmatpush1.bf16.msra.mxu0 %v681
        %2312 = vmatprep.subr.bf16.mxu0 %v707
        %2313 = vmatpush1.bf16.msra.mxu0 %v706
        %2314 = vmatprep.subr.bf16.mxu0 %v732
        %2315 = vmatpush1.bf16.msra.mxu0 %v731
        %2316 = vmatprep.subr.bf16.mxu0 0
        %2317 = vmatpush1.bf16.msra.mxu0 0
        %2318 = vmatprep.subr.bf16.mxu0 0
        %2319 = vmatpush1.bf16.msra.mxu0 0
        %2320 = vmatprep.subr.bf16.mxu0 0
        %2321 = vmatpush1.bf16.msra.mxu0 0
        %2322 = vmatprep.subr.bf16.mxu0 0
        %2323 = vmatpush1.bf16.msra.mxu0 0
        %2324 = vmatprep.subr.bf16.mxu0 0
        %2325 = vmatpush1.bf16.msra.mxu0 0
        %2326 = vmatprep.subr.bf16.mxu0 0
        %2327 = vmatpush1.bf16.msra.mxu0 0
        %2328 = vmatprep.subr.bf16.mxu0 0
        %2329 = vmatpush1.bf16.msra.mxu0 0
        %2330 = vmatprep.subr.bf16.mxu0 0
        %2331 = vmatpush1.bf16.msra.mxu0 0
        %2332 = vmatprep.subr.bf16.mxu0 0
        %2333 = vmatpush1.bf16.msra.mxu0 0
        %2334 = vmatprep.subr.bf16.mxu0 0
        %2335 = vmatpush1.bf16.msra.mxu0 0
        %2336 = vmatprep.subr.bf16.mxu0 0
        %2337 = vmatpush1.bf16.msra.mxu0 0
        %2338 = vmatprep.subr.bf16.mxu0 0
        %2339 = vmatpush1.bf16.msra.mxu0 0
        %2340 = vmatprep.mubr.bf16.mxu0 0
        %2341 = vmatmul.mubr.bf16.gmra.mrb[0].mxu0 %v1962
        %v2342 = vpop.f32.mrb[0].mxu0
        %v2343 = vadd.f32 0.0, %v2342
        %v2344 = vpop.f32.mrb[0].mxu0
        %v2345 = vadd.f32 0.0, %v2344
        %v2346 = vpop.f32.mrb[0].mxu0
        %v2347 = vadd.f32 0.0, %v2346
        %v2348 = vpop.f32.mrb[0].mxu0
        %v2349 = vadd.f32 0.0, %v2348
        %2350 = vdwg.mxu0
        %2351 = vmatprep.subr.bf16.mxu0 %v659
        %2352 = vmatpush1.bf16.msra.mxu0 %v658
        %2353 = vmatprep.subr.bf16.mxu0 %v684
        %2354 = vmatpush1.bf16.msra.mxu0 %v683
        %2355 = vmatprep.subr.bf16.mxu0 %v709
        %2356 = vmatpush1.bf16.msra.mxu0 %v708
        %2357 = vmatprep.subr.bf16.mxu0 %v734
        %2358 = vmatpush1.bf16.msra.mxu0 %v733
        %2359 = vmatprep.subr.bf16.mxu0 0
        %2360 = vmatpush1.bf16.msra.mxu0 0
        %2361 = vmatprep.subr.bf16.mxu0 0
        %2362 = vmatpush1.bf16.msra.mxu0 0
        %2363 = vmatprep.subr.bf16.mxu0 0
        %2364 = vmatpush1.bf16.msra.mxu0 0
        %2365 = vmatprep.subr.bf16.mxu0 0
        %2366 = vmatpush1.bf16.msra.mxu0 0
        %2367 = vmatprep.subr.bf16.mxu0 0
        %2368 = vmatpush1.bf16.msra.mxu0 0
        %2369 = vmatprep.subr.bf16.mxu0 0
        %2370 = vmatpush1.bf16.msra.mxu0 0
        %2371 = vmatprep.subr.bf16.mxu0 0
        %2372 = vmatpush1.bf16.msra.mxu0 0
        %2373 = vmatprep.subr.bf16.mxu0 0
        %2374 = vmatpush1.bf16.msra.mxu0 0
        %2375 = vmatprep.subr.bf16.mxu0 0
        %2376 = vmatpush1.bf16.msra.mxu0 0
        %2377 = vmatprep.subr.bf16.mxu0 0
        %2378 = vmatpush1.bf16.msra.mxu0 0
        %2379 = vmatprep.subr.bf16.mxu0 0
        %2380 = vmatpush1.bf16.msra.mxu0 0
        %2381 = vmatprep.subr.bf16.mxu0 0
        %2382 = vmatpush1.bf16.msra.mxu0 0
        %2383 = vmatprep.mubr.bf16.mxu0 0
        %2384 = vmatmul.mubr.bf16.gmra.mrb[0].mxu0 %v1962
        %v2385 = vpop.f32.mrb[0].mxu0
        %v2386 = vadd.f32 0.0, %v2385
        %v2387 = vpop.f32.mrb[0].mxu0
        %v2388 = vadd.f32 0.0, %v2387
        %v2389 = vpop.f32.mrb[0].mxu0
        %v2390 = vadd.f32 0.0, %v2389
        %v2391 = vpop.f32.mrb[0].mxu0
        %v2392 = vadd.f32 0.0, %v2391
        %2393 = vdwg.mxu0
        %2394 = vmatprep.subr.bf16.mxu0 %v661
        %2395 = vmatpush1.bf16.msra.mxu0 %v660
        %2396 = vmatprep.subr.bf16.mxu0 %v686
        %2397 = vmatpush1.bf16.msra.mxu0 %v685
        %2398 = vmatprep.subr.bf16.mxu0 %v711
        %2399 = vmatpush1.bf16.msra.mxu0 %v710
        %2400 = vmatprep.subr.bf16.mxu0 %v736
        %2401 = vmatpush1.bf16.msra.mxu0 %v735
        %2402 = vmatprep.subr.bf16.mxu0 0
        %2403 = vmatpush1.bf16.msra.mxu0 0
        %2404 = vmatprep.subr.bf16.mxu0 0
        %2405 = vmatpush1.bf16.msra.mxu0 0
        %2406 = vmatprep.subr.bf16.mxu0 0
        %2407 = vmatpush1.bf16.msra.mxu0 0
        %2408 = vmatprep.subr.bf16.mxu0 0
        %2409 = vmatpush1.bf16.msra.mxu0 0
        %2410 = vmatprep.subr.bf16.mxu0 0
        %2411 = vmatpush1.bf16.msra.mxu0 0
        %2412 = vmatprep.subr.bf16.mxu0 0
        %2413 = vmatpush1.bf16.msra.mxu0 0
        %2414 = vmatprep.subr.bf16.mxu0 0
        %2415 = vmatpush1.bf16.msra.mxu0 0
        %2416 = vmatprep.subr.bf16.mxu0 0
        %2417 = vmatpush1.bf16.msra.mxu0 0
        %2418 = vmatprep.subr.bf16.mxu0 0
        %2419 = vmatpush1.bf16.msra.mxu0 0
        %2420 = vmatprep.subr.bf16.mxu0 0
        %2421 = vmatpush1.bf16.msra.mxu0 0
        %2422 = vmatprep.subr.bf16.mxu0 0
        %2423 = vmatpush1.bf16.msra.mxu0 0
        %2424 = vmatprep.subr.bf16.mxu0 0
        %2425 = vmatpush1.bf16.msra.mxu0 0
        %2426 = vmatprep.mubr.bf16.mxu0 0
        %2427 = vmatmul.mubr.bf16.gmra.mrb[0].mxu0 %v1962
        %v2428 = vpop.f32.mrb[0].mxu0
        %v2429 = vadd.f32 0.0, %v2428
        %v2430 = vpop.f32.mrb[0].mxu0
        %v2431 = vadd.f32 0.0, %v2430
        %v2432 = vpop.f32.mrb[0].mxu0
        %v2433 = vadd.f32 0.0, %v2432
        %v2434 = vpop.f32.mrb[0].mxu0
        %v2435 = vadd.f32 0.0, %v2434
        %2436 = vdwg.mxu0
        %2437 = vmatprep.subr.bf16.mxu0 %v663
        %2438 = vmatpush1.bf16.msra.mxu0 %v662
        %2439 = vmatprep.subr.bf16.mxu0 %v688
        %2440 = vmatpush1.bf16.msra.mxu0 %v687
        %2441 = vmatprep.subr.bf16.mxu0 %v713
        %2442 = vmatpush1.bf16.msra.mxu0 %v712
        %2443 = vmatprep.subr.bf16.mxu0 %v738
        %2444 = vmatpush1.bf16.msra.mxu0 %v737
        %2445 = vmatprep.subr.bf16.mxu0 0
        %2446 = vmatpush1.bf16.msra.mxu0 0
        %2447 = vmatprep.subr.bf16.mxu0 0
        %2448 = vmatpush1.bf16.msra.mxu0 0
        %2449 = vmatprep.subr.bf16.mxu0 0
        %2450 = vmatpush1.bf16.msra.mxu0 0
        %2451 = vmatprep.subr.bf16.mxu0 0
        %2452 = vmatpush1.bf16.msra.mxu0 0
        %2453 = vmatprep.subr.bf16.mxu0 0
        %2454 = vmatpush1.bf16.msra.mxu0 0
        %2455 = vmatprep.subr.bf16.mxu0 0
        %2456 = vmatpush1.bf16.msra.mxu0 0
        %2457 = vmatprep.subr.bf16.mxu0 0
        %2458 = vmatpush1.bf16.msra.mxu0 0
        %2459 = vmatprep.subr.bf16.mxu0 0
        %2460 = vmatpush1.bf16.msra.mxu0 0
        %2461 = vmatprep.subr.bf16.mxu0 0
        %2462 = vmatpush1.bf16.msra.mxu0 0
        %2463 = vmatprep.subr.bf16.mxu0 0
        %2464 = vmatpush1.bf16.msra.mxu0 0
        %2465 = vmatprep.subr.bf16.mxu0 0
        %2466 = vmatpush1.bf16.msra.mxu0 0
        %2467 = vmatprep.subr.bf16.mxu0 0
        %2468 = vmatpush1.bf16.msra.mxu0 0
        %2469 = vmatprep.mubr.bf16.mxu0 0
        %2470 = vmatmul.mubr.bf16.gmra.mrb[0].mxu0 %v1962
        %v2471 = vpop.f32.mrb[0].mxu0
        %v2472 = vadd.f32 0.0, %v2471
        %v2473 = vpop.f32.mrb[0].mxu0
        %v2474 = vadd.f32 0.0, %v2473
        %v2475 = vpop.f32.mrb[0].mxu0
        %v2476 = vadd.f32 0.0, %v2475
        %v2477 = vpop.f32.mrb[0].mxu0
        %v2478 = vadd.f32 0.0, %v2477
        %2479 = vdwg.mxu0
        %2480 = vmatprep.subr.bf16.mxu0 0
        %2481 = vmatpush1.bf16.msra.mxu0 %v664
        %2482 = vmatprep.subr.bf16.mxu0 0
        %2483 = vmatpush1.bf16.msra.mxu0 %v689
        %2484 = vmatprep.subr.bf16.mxu0 0
        %2485 = vmatpush1.bf16.msra.mxu0 %v714
        %2486 = vmatprep.subr.bf16.mxu0 0
        %2487 = vmatpush1.bf16.msra.mxu0 %v739
        %2488 = vmatprep.subr.bf16.mxu0 0
        %2489 = vmatpush1.bf16.msra.mxu0 0
        %2490 = vmatprep.subr.bf16.mxu0 0
        %2491 = vmatpush1.bf16.msra.mxu0 0
        %2492 = vmatprep.subr.bf16.mxu0 0
        %2493 = vmatpush1.bf16.msra.mxu0 0
        %2494 = vmatprep.subr.bf16.mxu0 0
        %2495 = vmatpush1.bf16.msra.mxu0 0
        %2496 = vmatprep.subr.bf16.mxu0 0
        %2497 = vmatpush1.bf16.msra.mxu0 0
        %2498 = vmatprep.subr.bf16.mxu0 0
        %2499 = vmatpush1.bf16.msra.mxu0 0
        %2500 = vmatprep.subr.bf16.mxu0 0
        %2501 = vmatpush1.bf16.msra.mxu0 0
        %2502 = vmatprep.subr.bf16.mxu0 0
        %2503 = vmatpush1.bf16.msra.mxu0 0
        %2504 = vmatprep.subr.bf16.mxu0 0
        %2505 = vmatpush1.bf16.msra.mxu0 0
        %2506 = vmatprep.subr.bf16.mxu0 0
        %2507 = vmatpush1.bf16.msra.mxu0 0
        %2508 = vmatprep.subr.bf16.mxu0 0
        %2509 = vmatpush1.bf16.msra.mxu0 0
        %2510 = vmatprep.subr.bf16.mxu0 0
        %2511 = vmatpush1.bf16.msra.mxu0 0
        %2512 = vmatprep.mubr.bf16.mxu0 0
        %2513 = vmatmul.mubr.bf16.gmra.mrb[0].mxu0 %v1962
        %v2514 = vpop.f32.mrb[0].mxu0
        %v2515 = vadd.f32 0.0, %v2514
        %v2516 = vpop.f32.mrb[0].mxu0
        %v2517 = vpop.f32.mrb[0].mxu0
        %v2518 = vadd.f32 0.0, %v2517
        %v2519 = vpop.f32.mrb[0].mxu0
        %2520 = vdwg.mxu0
        %v2521 = vadd.f32 %v1439, %v1999
        %v2522 = vadd.f32 %v1441, %v2001
        %v2523 = vadd.f32 %v1482, %v2042
        %v2524 = vadd.f32 %v1484, %v2044
        %v2525 = vadd.f32 %v1525, %v2085
        %v2526 = vadd.f32 %v1527, %v2087
        %v2527 = vadd.f32 %v1568, %v2128
        %v2528 = vadd.f32 %v1570, %v2130
        %v2529 = vadd.f32 %v1611, %v2171
        %v2530 = vadd.f32 %v1613, %v2173
        %v2531 = vadd.f32 %v1654, %v2214
        %v2532 = vadd.f32 %v1656, %v2216
        %v2533 = vadd.f32 %v1697, %v2257
        %v2534 = vadd.f32 %v1699, %v2259
        %v2535 = vadd.f32 %v1740, %v2300
        %v2536 = vadd.f32 %v1742, %v2302
        %v2537 = vadd.f32 %v1783, %v2343
        %v2538 = vadd.f32 %v1785, %v2345
        %v2539 = vadd.f32 %v1826, %v2386
        %v2540 = vadd.f32 %v1828, %v2388
        %v2541 = vadd.f32 %v1869, %v2429
        %v2542 = vadd.f32 %v1871, %v2431
        %v2543 = vadd.f32 %v1912, %v2472
        %v2544 = vadd.f32 %v1914, %v2474
        %v2545 = vadd.f32 %v1955, %v2515
        %v2546 = vadd.f32 %v1443, %v2003
        %v2547 = vadd.f32 %v1445, %v2005
        %v2548 = vadd.f32 %v1486, %v2046
        %v2549 = vadd.f32 %v1488, %v2048
        %v2550 = vadd.f32 %v1529, %v2089
        %v2551 = vadd.f32 %v1531, %v2091
        %v2552 = vadd.f32 %v1572, %v2132
        %v2553 = vadd.f32 %v1574, %v2134
        %v2554 = vadd.f32 %v1615, %v2175
        %v2555 = vadd.f32 %v1617, %v2177
        %v2556 = vadd.f32 %v1658, %v2218
        %v2557 = vadd.f32 %v1660, %v2220
        %v2558 = vadd.f32 %v1701, %v2261
        %v2559 = vadd.f32 %v1703, %v2263
        %v2560 = vadd.f32 %v1744, %v2304
        %v2561 = vadd.f32 %v1746, %v2306
        %v2562 = vadd.f32 %v1787, %v2347
        %v2563 = vadd.f32 %v1789, %v2349
        %v2564 = vadd.f32 %v1830, %v2390
        %v2565 = vadd.f32 %v1832, %v2392
        %v2566 = vadd.f32 %v1873, %v2433
        %v2567 = vadd.f32 %v1875, %v2435
        %v2568 = vadd.f32 %v1916, %v2476
        %v2569 = vadd.f32 %v1918, %v2478
        %v2570 = vadd.f32 %v1958, %v2518
        %v2571 = vld [vmem:[#allocation7] sm:$0xff]
        %v2572 = vld [vmem:[#allocation7 + $0x8] sm:$0xff]
        %v2573 = vld [vmem:[#allocation7 + $0x10] sm:$0xff]
        %v2574 = vld [vmem:[#allocation7 + $0x18] sm:$0x1]
        %v2579 = vlaneseq
        %v2580 = vshrl.u32 %v2579, 7
        %v2581 = vsub.s32 0, %v2580
        %v2582 = vrot.slane %v2571, %v2581
        %v2583 = vlaneseq
        %v2584 = vshrl.u32 %v2583, 7
        %v2585 = vsub.s32 1, %v2584
        %v2586 = vrot.slane %v2571, %v2585
        %v2587 = vlaneseq
        %v2588 = vshrl.u32 %v2587, 7
        %v2589 = vsub.s32 2, %v2588
        %v2590 = vrot.slane %v2571, %v2589
        %v2591 = vlaneseq
        %v2592 = vshrl.u32 %v2591, 7
        %v2593 = vsub.s32 3, %v2592
        %v2594 = vrot.slane %v2571, %v2593
        %v2595 = vlaneseq
        %v2596 = vshrl.u32 %v2595, 7
        %v2597 = vsub.s32 4, %v2596
        %v2598 = vrot.slane %v2571, %v2597
        %v2599 = vlaneseq
        %v2600 = vshrl.u32 %v2599, 7
        %v2601 = vsub.s32 5, %v2600
        %v2602 = vrot.slane %v2571, %v2601
        %v2603 = vlaneseq
        %v2604 = vshrl.u32 %v2603, 7
        %v2605 = vsub.s32 6, %v2604
        %v2606 = vrot.slane %v2571, %v2605
        %v2607 = vlaneseq
        %v2608 = vshrl.u32 %v2607, 7
        %v2609 = vsub.s32 7, %v2608
        %v2610 = vrot.slane %v2571, %v2609
        %v2611 = vlaneseq
        %v2612 = vshrl.u32 %v2611, 7
        %v2613 = vsub.s32 0, %v2612
        %v2614 = vrot.slane %v2572, %v2613
        %v2615 = vlaneseq
        %v2616 = vshrl.u32 %v2615, 7
        %v2617 = vsub.s32 1, %v2616
        %v2618 = vrot.slane %v2572, %v2617
        %v2619 = vlaneseq
        %v2620 = vshrl.u32 %v2619, 7
        %v2621 = vsub.s32 2, %v2620
        %v2622 = vrot.slane %v2572, %v2621
        %v2623 = vlaneseq
        %v2624 = vshrl.u32 %v2623, 7
        %v2625 = vsub.s32 3, %v2624
        %v2626 = vrot.slane %v2572, %v2625
        %v2627 = vlaneseq
        %v2628 = vshrl.u32 %v2627, 7
        %v2629 = vsub.s32 4, %v2628
        %v2630 = vrot.slane %v2572, %v2629
        %v2631 = vlaneseq
        %v2632 = vshrl.u32 %v2631, 7
        %v2633 = vsub.s32 5, %v2632
        %v2634 = vrot.slane %v2572, %v2633
        %v2635 = vlaneseq
        %v2636 = vshrl.u32 %v2635, 7
        %v2637 = vsub.s32 6, %v2636
        %v2638 = vrot.slane %v2572, %v2637
        %v2639 = vlaneseq
        %v2640 = vshrl.u32 %v2639, 7
        %v2641 = vsub.s32 7, %v2640
        %v2642 = vrot.slane %v2572, %v2641
        %v2643 = vlaneseq
        %v2644 = vshrl.u32 %v2643, 7
        %v2645 = vsub.s32 0, %v2644
        %v2646 = vrot.slane %v2573, %v2645
        %v2647 = vlaneseq
        %v2648 = vshrl.u32 %v2647, 7
        %v2649 = vsub.s32 1, %v2648
        %v2650 = vrot.slane %v2573, %v2649
        %v2651 = vlaneseq
        %v2652 = vshrl.u32 %v2651, 7
        %v2653 = vsub.s32 2, %v2652
        %v2654 = vrot.slane %v2573, %v2653
        %v2655 = vlaneseq
        %v2656 = vshrl.u32 %v2655, 7
        %v2657 = vsub.s32 3, %v2656
        %v2658 = vrot.slane %v2573, %v2657
        %v2659 = vlaneseq
        %v2660 = vshrl.u32 %v2659, 7
        %v2661 = vsub.s32 4, %v2660
        %v2662 = vrot.slane %v2573, %v2661
        %v2663 = vlaneseq
        %v2664 = vshrl.u32 %v2663, 7
        %v2665 = vsub.s32 5, %v2664
        %v2666 = vrot.slane %v2573, %v2665
        %v2667 = vlaneseq
        %v2668 = vshrl.u32 %v2667, 7
        %v2669 = vsub.s32 6, %v2668
        %v2670 = vrot.slane %v2573, %v2669
        %v2671 = vlaneseq
        %v2672 = vshrl.u32 %v2671, 7
        %v2673 = vsub.s32 7, %v2672
        %v2674 = vrot.slane %v2573, %v2673
        %v2675 = vlaneseq
        %v2676 = vshrl.u32 %v2675, 7
        %v2677 = vsub.s32 0, %v2676
        %v2678 = vrot.slane %v2574, %v2677
        %v2704 = vsub.f32 %v2521, %v2582
        %v2705 = vsub.f32 %v2522, %v2586
        %v2706 = vsub.f32 %v2523, %v2590
        %v2707 = vsub.f32 %v2524, %v2594
        %v2708 = vsub.f32 %v2525, %v2598
        %v2709 = vsub.f32 %v2526, %v2602
        %v2710 = vsub.f32 %v2527, %v2606
        %v2711 = vsub.f32 %v2528, %v2610
        %v2712 = vsub.f32 %v2529, %v2614
        %v2713 = vsub.f32 %v2530, %v2618
        %v2714 = vsub.f32 %v2531, %v2622
        %v2715 = vsub.f32 %v2532, %v2626
        %v2716 = vsub.f32 %v2533, %v2630
        %v2717 = vsub.f32 %v2534, %v2634
        %v2718 = vsub.f32 %v2535, %v2638
        %v2719 = vsub.f32 %v2536, %v2642
        %v2720 = vsub.f32 %v2537, %v2646
        %v2721 = vsub.f32 %v2538, %v2650
        %v2722 = vsub.f32 %v2539, %v2654
        %v2723 = vsub.f32 %v2540, %v2658
        %v2724 = vsub.f32 %v2541, %v2662
        %v2725 = vsub.f32 %v2542, %v2666
        %v2726 = vsub.f32 %v2543, %v2670
        %v2727 = vsub.f32 %v2544, %v2674
        %v2728 = vsub.f32 %v2545, %v2678
        %v2729 = vsub.f32 %v2546, %v2582
        %v2730 = vsub.f32 %v2547, %v2586
        %v2731 = vsub.f32 %v2548, %v2590
        %v2732 = vsub.f32 %v2549, %v2594
        %v2733 = vsub.f32 %v2550, %v2598
        %v2734 = vsub.f32 %v2551, %v2602
        %v2735 = vsub.f32 %v2552, %v2606
        %v2736 = vsub.f32 %v2553, %v2610
        %v2737 = vsub.f32 %v2554, %v2614
        %v2738 = vsub.f32 %v2555, %v2618
        %v2739 = vsub.f32 %v2556, %v2622
        %v2740 = vsub.f32 %v2557, %v2626
        %v2741 = vsub.f32 %v2558, %v2630
        %v2742 = vsub.f32 %v2559, %v2634
        %v2743 = vsub.f32 %v2560, %v2638
        %v2744 = vsub.f32 %v2561, %v2642
        %v2745 = vsub.f32 %v2562, %v2646
        %v2746 = vsub.f32 %v2563, %v2650
        %v2747 = vsub.f32 %v2564, %v2654
        %v2748 = vsub.f32 %v2565, %v2658
        %v2749 = vsub.f32 %v2566, %v2662
        %v2750 = vsub.f32 %v2567, %v2666
        %v2751 = vsub.f32 %v2568, %v2670
        %v2752 = vsub.f32 %v2569, %v2674
        %v2753 = vsub.f32 %v2570, %v2678
        %v2754 = vmul.f32 %v2704, %v2704
        %v2755 = vmul.f32 %v2705, %v2705
        %v2756 = vmul.f32 %v2706, %v2706
        %v2757 = vmul.f32 %v2707, %v2707
        %v2758 = vmul.f32 %v2708, %v2708
        %v2759 = vmul.f32 %v2709, %v2709
        %v2760 = vmul.f32 %v2710, %v2710
        %v2761 = vmul.f32 %v2711, %v2711
        %v2762 = vmul.f32 %v2712, %v2712
        %v2763 = vmul.f32 %v2713, %v2713
        %v2764 = vmul.f32 %v2714, %v2714
        %v2765 = vmul.f32 %v2715, %v2715
        %v2766 = vmul.f32 %v2716, %v2716
        %v2767 = vmul.f32 %v2717, %v2717
        %v2768 = vmul.f32 %v2718, %v2718
        %v2769 = vmul.f32 %v2719, %v2719
        %v2770 = vmul.f32 %v2720, %v2720
        %v2771 = vmul.f32 %v2721, %v2721
        %v2772 = vmul.f32 %v2722, %v2722
        %v2773 = vmul.f32 %v2723, %v2723
        %v2774 = vmul.f32 %v2724, %v2724
        %v2775 = vmul.f32 %v2725, %v2725
        %v2776 = vmul.f32 %v2726, %v2726
        %v2777 = vmul.f32 %v2727, %v2727
        %v2778 = vmul.f32 %v2728, %v2728
        %v2779 = vmul.f32 %v2729, %v2729
        %v2780 = vmul.f32 %v2730, %v2730
        %v2781 = vmul.f32 %v2731, %v2731
        %v2782 = vmul.f32 %v2732, %v2732
        %v2783 = vmul.f32 %v2733, %v2733
        %v2784 = vmul.f32 %v2734, %v2734
        %v2785 = vmul.f32 %v2735, %v2735
        %v2786 = vmul.f32 %v2736, %v2736
        %v2787 = vmul.f32 %v2737, %v2737
        %v2788 = vmul.f32 %v2738, %v2738
        %v2789 = vmul.f32 %v2739, %v2739
        %v2790 = vmul.f32 %v2740, %v2740
        %v2791 = vmul.f32 %v2741, %v2741
        %v2792 = vmul.f32 %v2742, %v2742
        %v2793 = vmul.f32 %v2743, %v2743
        %v2794 = vmul.f32 %v2744, %v2744
        %v2795 = vmul.f32 %v2745, %v2745
        %v2796 = vmul.f32 %v2746, %v2746
        %v2797 = vmul.f32 %v2747, %v2747
        %v2798 = vmul.f32 %v2748, %v2748
        %v2799 = vmul.f32 %v2749, %v2749
        %v2800 = vmul.f32 %v2750, %v2750
        %v2801 = vmul.f32 %v2751, %v2751
        %v2802 = vmul.f32 %v2752, %v2752
        %v2803 = vmul.f32 %v2753, %v2753
        %v2804 = vmul.f32 %v2754, -48.02
        %v2805 = vmul.f32 %v2755, -48.02
        %v2806 = vmul.f32 %v2756, -48.02
        %v2807 = vmul.f32 %v2757, -48.02
        %v2808 = vmul.f32 %v2758, -48.02
        %v2809 = vmul.f32 %v2759, -48.02
        %v2810 = vmul.f32 %v2760, -48.02
        %v2811 = vmul.f32 %v2761, -48.02
        %v2812 = vmul.f32 %v2762, -48.02
        %v2813 = vmul.f32 %v2763, -48.02
        %v2814 = vmul.f32 %v2764, -48.02
        %v2815 = vmul.f32 %v2765, -48.02
        %v2816 = vmul.f32 %v2766, -48.02
        %v2817 = vmul.f32 %v2767, -48.02
        %v2818 = vmul.f32 %v2768, -48.02
        %v2819 = vmul.f32 %v2769, -48.02
        %v2820 = vmul.f32 %v2770, -48.02
        %v2821 = vmul.f32 %v2771, -48.02
        %v2822 = vmul.f32 %v2772, -48.02
        %v2823 = vmul.f32 %v2773, -48.02
        %v2824 = vmul.f32 %v2774, -48.02
        %v2825 = vmul.f32 %v2775, -48.02
        %v2826 = vmul.f32 %v2776, -48.02
        %v2827 = vmul.f32 %v2777, -48.02
        %v2828 = vmul.f32 %v2778, -48.02
        %v2829 = vmul.f32 %v2779, -48.02
        %v2830 = vmul.f32 %v2780, -48.02
        %v2831 = vmul.f32 %v2781, -48.02
        %v2832 = vmul.f32 %v2782, -48.02
        %v2833 = vmul.f32 %v2783, -48.02
        %v2834 = vmul.f32 %v2784, -48.02
        %v2835 = vmul.f32 %v2785, -48.02
        %v2836 = vmul.f32 %v2786, -48.02
        %v2837 = vmul.f32 %v2787, -48.02
        %v2838 = vmul.f32 %v2788, -48.02
        %v2839 = vmul.f32 %v2789, -48.02
        %v2840 = vmul.f32 %v2790, -48.02
        %v2841 = vmul.f32 %v2791, -48.02
        %v2842 = vmul.f32 %v2792, -48.02
        %v2843 = vmul.f32 %v2793, -48.02
        %v2844 = vmul.f32 %v2794, -48.02
        %v2845 = vmul.f32 %v2795, -48.02
        %v2846 = vmul.f32 %v2796, -48.02
        %v2847 = vmul.f32 %v2797, -48.02
        %v2848 = vmul.f32 %v2798, -48.02
        %v2849 = vmul.f32 %v2799, -48.02
        %v2850 = vmul.f32 %v2800, -48.02
        %v2851 = vmul.f32 %v2801, -48.02
        %v2852 = vmul.f32 %v2802, -48.02
        %v2853 = vmul.f32 %v2803, -48.02
        %v2854 = vmul.f32 %v2804, 1.442695
        %v2855 = vpow.pop %v2854
        %v2856 = vmul.f32 %v2805, 1.442695
        %v2857 = vpow.pop %v2856
        %v2858 = vmul.f32 %v2806, 1.442695
        %v2859 = vpow.pop %v2858
        %v2860 = vmul.f32 %v2807, 1.442695
        %v2861 = vpow.pop %v2860
        %v2862 = vmul.f32 %v2808, 1.442695
        %v2863 = vpow.pop %v2862
        %v2864 = vmul.f32 %v2809, 1.442695
        %v2865 = vpow.pop %v2864
        %v2866 = vmul.f32 %v2810, 1.442695
        %v2867 = vpow.pop %v2866
        %v2868 = vmul.f32 %v2811, 1.442695
        %v2869 = vpow.pop %v2868
        %v2870 = vmul.f32 %v2812, 1.442695
        %v2871 = vpow.pop %v2870
        %v2872 = vmul.f32 %v2813, 1.442695
        %v2873 = vpow.pop %v2872
        %v2874 = vmul.f32 %v2814, 1.442695
        %v2875 = vpow.pop %v2874
        %v2876 = vmul.f32 %v2815, 1.442695
        %v2877 = vpow.pop %v2876
        %v2878 = vmul.f32 %v2816, 1.442695
        %v2879 = vpow.pop %v2878
        %v2880 = vmul.f32 %v2817, 1.442695
        %v2881 = vpow.pop %v2880
        %v2882 = vmul.f32 %v2818, 1.442695
        %v2883 = vpow.pop %v2882
        %v2884 = vmul.f32 %v2819, 1.442695
        %v2885 = vpow.pop %v2884
        %v2886 = vmul.f32 %v2820, 1.442695
        %v2887 = vpow.pop %v2886
        %v2888 = vmul.f32 %v2821, 1.442695
        %v2889 = vpow.pop %v2888
        %v2890 = vmul.f32 %v2822, 1.442695
        %v2891 = vpow.pop %v2890
        %v2892 = vmul.f32 %v2823, 1.442695
        %v2893 = vpow.pop %v2892
        %v2894 = vmul.f32 %v2824, 1.442695
        %v2895 = vpow.pop %v2894
        %v2896 = vmul.f32 %v2825, 1.442695
        %v2897 = vpow.pop %v2896
        %v2898 = vmul.f32 %v2826, 1.442695
        %v2899 = vpow.pop %v2898
        %v2900 = vmul.f32 %v2827, 1.442695
        %v2901 = vpow.pop %v2900
        %v2902 = vmul.f32 %v2828, 1.442695
        %v2903 = vpow.pop %v2902
        %v2904 = vmul.f32 %v2829, 1.442695
        %v2905 = vpow.pop %v2904
        %v2906 = vmul.f32 %v2830, 1.442695
        %v2907 = vpow.pop %v2906
        %v2908 = vmul.f32 %v2831, 1.442695
        %v2909 = vpow.pop %v2908
        %v2910 = vmul.f32 %v2832, 1.442695
        %v2911 = vpow.pop %v2910
        %v2912 = vmul.f32 %v2833, 1.442695
        %v2913 = vpow.pop %v2912
        %v2914 = vmul.f32 %v2834, 1.442695
        %v2915 = vpow.pop %v2914
        %v2916 = vmul.f32 %v2835, 1.442695
        %v2917 = vpow.pop %v2916
        %v2918 = vmul.f32 %v2836, 1.442695
        %v2919 = vpow.pop %v2918
        %v2920 = vmul.f32 %v2837, 1.442695
        %v2921 = vpow.pop %v2920
        %v2922 = vmul.f32 %v2838, 1.442695
        %v2923 = vpow.pop %v2922
        %v2924 = vmul.f32 %v2839, 1.442695
        %v2925 = vpow.pop %v2924
        %v2926 = vmul.f32 %v2840, 1.442695
        %v2927 = vpow.pop %v2926
        %v2928 = vmul.f32 %v2841, 1.442695
        %v2929 = vpow.pop %v2928
        %v2930 = vmul.f32 %v2842, 1.442695
        %v2931 = vpow.pop %v2930
        %v2932 = vmul.f32 %v2843, 1.442695
        %v2933 = vpow.pop %v2932
        %v2934 = vmul.f32 %v2844, 1.442695
        %v2935 = vpow.pop %v2934
        %v2936 = vmul.f32 %v2845, 1.442695
        %v2937 = vpow.pop %v2936
        %v2938 = vmul.f32 %v2846, 1.442695
        %v2939 = vpow.pop %v2938
        %v2940 = vmul.f32 %v2847, 1.442695
        %v2941 = vpow.pop %v2940
        %v2942 = vmul.f32 %v2848, 1.442695
        %v2943 = vpow.pop %v2942
        %v2944 = vmul.f32 %v2849, 1.442695
        %v2945 = vpow.pop %v2944
        %v2946 = vmul.f32 %v2850, 1.442695
        %v2947 = vpow.pop %v2946
        %v2948 = vmul.f32 %v2851, 1.442695
        %v2949 = vpow.pop %v2948
        %v2950 = vmul.f32 %v2852, 1.442695
        %v2951 = vpow.pop %v2950
        %v2952 = vmul.f32 %v2853, 1.442695
        %v2953 = vpow.pop %v2952
        %2954 = vst [vmem:[%s215] sm:$0xff] %v2855
        %2955 = vst [vmem:[%s215 + $0x8] sm:$0xff] %v2857
        %2956 = vst [vmem:[%s215 + $0x10] sm:$0xff] %v2859
        %2957 = vst [vmem:[%s215 + $0x18] sm:$0xff] %v2861
        %2958 = vst [vmem:[%s215 + $0x20] sm:$0xff] %v2863
        %2959 = vst [vmem:[%s215 + $0x28] sm:$0xff] %v2865
        %2960 = vst [vmem:[%s215 + $0x30] sm:$0xff] %v2867
        %2961 = vst [vmem:[%s215 + $0x38] sm:$0xff] %v2869
        %2962 = vst [vmem:[%s215 + $0x40] sm:$0xff] %v2871
        %2963 = vst [vmem:[%s215 + $0x48] sm:$0xff] %v2873
        %2964 = vst [vmem:[%s215 + $0x50] sm:$0xff] %v2875
        %2965 = vst [vmem:[%s215 + $0x58] sm:$0xff] %v2877
        %2966 = vst [vmem:[%s215 + $0x60] sm:$0xff] %v2879
        %2967 = vst [vmem:[%s215 + $0x68] sm:$0xff] %v2881
        %2968 = vst [vmem:[%s215 + $0x70] sm:$0xff] %v2883
        %2969 = vst [vmem:[%s215 + $0x78] sm:$0xff] %v2885
        %2970 = vst [vmem:[%s215 + $0x80] sm:$0xff] %v2887
        %2971 = vst [vmem:[%s215 + $0x88] sm:$0xff] %v2889
        %2972 = vst [vmem:[%s215 + $0x90] sm:$0xff] %v2891
        %2973 = vst [vmem:[%s215 + $0x98] sm:$0xff] %v2893
        %2974 = vst [vmem:[%s215 + $0xa0] sm:$0xff] %v2895
        %2975 = vst [vmem:[%s215 + $0xa8] sm:$0xff] %v2897
        %2976 = vst [vmem:[%s215 + $0xb0] sm:$0xff] %v2899
        %2977 = vst [vmem:[%s215 + $0xb8] sm:$0xff] %v2901
        %2978 = vst [vmem:[%s215 + $0xc0] sm:$0xff] %v2903
        %2979 = vst [vmem:[%s215 + $0xc8] sm:$0xff] %v2905
        %2980 = vst [vmem:[%s215 + $0xd0] sm:$0xff] %v2907
        %2981 = vst [vmem:[%s215 + $0xd8] sm:$0xff] %v2909
        %2982 = vst [vmem:[%s215 + $0xe0] sm:$0xff] %v2911
        %2983 = vst [vmem:[%s215 + $0xe8] sm:$0xff] %v2913
        %2984 = vst [vmem:[%s215 + $0xf0] sm:$0xff] %v2915
        %2985 = vst [vmem:[%s215 + $0xf8] sm:$0xff] %v2917
        %2986 = vst [vmem:[%s215 + $0x100] sm:$0xff] %v2919
        %2987 = vst [vmem:[%s215 + $0x108] sm:$0xff] %v2921
        %2988 = vst [vmem:[%s215 + $0x110] sm:$0xff] %v2923
        %2989 = vst [vmem:[%s215 + $0x118] sm:$0xff] %v2925
        %2990 = vst [vmem:[%s215 + $0x120] sm:$0xff] %v2927
        %2991 = vst [vmem:[%s215 + $0x128] sm:$0xff] %v2929
        %2992 = vst [vmem:[%s215 + $0x130] sm:$0xff] %v2931
        %2993 = vst [vmem:[%s215 + $0x138] sm:$0xff] %v2933
        %2994 = vst [vmem:[%s215 + $0x140] sm:$0xff] %v2935
        %2995 = vst [vmem:[%s215 + $0x148] sm:$0xff] %v2937
        %2996 = vst [vmem:[%s215 + $0x150] sm:$0xff] %v2939
        %2997 = vst [vmem:[%s215 + $0x158] sm:$0xff] %v2941
        %2998 = vst [vmem:[%s215 + $0x160] sm:$0xff] %v2943
        %2999 = vst [vmem:[%s215 + $0x168] sm:$0xff] %v2945
        %3000 = vst [vmem:[%s215 + $0x170] sm:$0xff] %v2947
        %3001 = vst [vmem:[%s215 + $0x178] sm:$0xff] %v2949
        %3002 = vst [vmem:[%s215 + $0x180] sm:$0xff] %v2951
        %3003 = vst [vmem:[%s215 + $0x188] sm:$0xff] %v2953
        %s3004 = sand.u32 %s97, 1
        %s3005 = scalar_lea.sflag [#allocation4], %s3004
        %s3006 = sand.u32 %s97, 1
        %s3007 = smul.addr %s3006, 400
        %s3008 = scalar_lea.vmem [#allocation8], %s3007
        // Predicated region
        $region45: #{tpu_custom_call.1} parent=31 // pred_check
          %p3009 = pneg %p107
        $region46: #{tpu_custom_call.1} parent=31 // pred_check_branch
          %3011 = sbr.rel (%p3009) target = $region48
        $region47: #{tpu_custom_call.1} parent=31 // pred_region
          %s3012 = smul.u32 2, %s21
          %s3014 = ssub.s32 6400, 6400
          %3015 = vsyncadd %s3005, %s3014
          %s3016 = smul.addr %s3012, 25
          %s3017 = smul.addr %s3016, 128
          %s3018 = scalar_lea.hbm %s3, %s3017
          %s3019 = sshll.u32 %s3008, 4
          %s3020 = int_to_ptr.vmem [resolvable:$true] %s3019
          %3025 = dma.vmem_to_hbm [thread:$0]  %s3020, 6400, %s3018, %s3005, 3200, 3200, 200
        $region48: #{tpu_custom_call.1} parent=31 // pred_fallthru
          _
      $region32: #{tpu_custom_call.1} parent=5 // pred_fallthru
        _
      %p3026 = scmp.le.s32.totalorder 2, %s16
      // Predicated region
      $region49: #{tpu_custom_call.1} parent=5 // pred_check
        %p3027 = pneg %p3026
      $region50: #{tpu_custom_call.1} parent=5 // pred_check_branch
        %3029 = sbr.rel (%p3027) target = $region52
      $region51: #{tpu_custom_call.1} parent=5 // pred_region
        %s3030 = ssub.s32 %s16, 2
        // Predicated region
        $region53: #{tpu_custom_call.1} parent=51 // pred_check
          %p3031 = pneg %p113
        $region54: #{tpu_custom_call.1} parent=51 // pred_check_branch
          %3033 = sbr.rel (%p3031) target = $region56
        $region55: #{tpu_custom_call.1} parent=51 // pred_region
          %s3034 = sand.u32 %s98, 1
          %s3035 = scalar_lea.sflag [#allocation4], %s3034
          %s3036 = sand.u32 %s98, 1
          %s3037 = smul.addr %s3036, 400
          %s3038 = scalar_lea.vmem [#allocation8], %s3037
          %3039 = dma.done %s3035, 6400
        $region56: #{tpu_custom_call.1} parent=51 // pred_fallthru
          _
      $region52: #{tpu_custom_call.1} parent=5 // pred_fallthru
        _
    $region6: #{tpu_custom_call.1} parent=1 // loop_footer
      %s20 = sadd.s32 1, %s16
    $region7: #{tpu_custom_call.1} parent=1 // loop_footer_branch
      %15 = sbr.rel target = $region3
    $region8: #{tpu_custom_call.1} parent=1 // loop_exit
      _
    %3040 = vsyncpa [#allocation3], 1
    %s3041 = scalar_lea.sflag [#allocation3], 1
    %3042 = vsyncpa %s3041, 1
    %3043 = vsyncpa [#allocation6], 1
    %3044 = vsyncpa [#allocation4], 1
    %s3045 = scalar_lea.sflag [#allocation4], 1
    %3046 = vsyncpa %s3045, 1

</llo_original>
